<compile_context>
chip_gen: v5e
topology: v5e:2x2
jax: 0.10.0
libtpu: 0.0.40
codegen_flags: <defaults>
</compile_context>

<pallas_src>
import functools

import jax
import jax.numpy as jnp
from jax.experimental import pallas as pl
from jax.experimental.pallas import tpu as pltpu

EPS = 1e-5


def resnet_block_kernel(x_ref, w1_ref, w2_ref, bn_ref, mask_ref, out_ref, *, W):
    """Fused residual block on (C, S) = (channels, N*H*W) float32 tiles."""
    # Hoist every ref load out of the tap loops; slice values, not refs.
    x = x_ref[...]          # (Cin,  S)
    w1 = w1_ref[...]        # (Cout, 9*Cin)   tap-major, then input channel
    w2 = w2_ref[...]        # (Cout, 9*Cout)
    bnp = bn_ref[...]       # (Cout, 4) = [gamma1, beta1, gamma2, beta2]
    masks = mask_ref[...]   # (9, S) 0/1 tap-validity masks (shared by both convs)

    _, S = x.shape
    cout = w1.shape[0]
    inv_count = 1.0 / S     # BN statistics run over (N, H, W) per channel.

    # Static lane shifts for the 9 taps of a 3x3 "same" conv on the flat axis.
    shifts = [(-((ky - 1) * W + (kx - 1))) % S
              for ky in range(3) for kx in range(3)]

    def conv3x3(a, w_flat):
        c = a.shape[0]
        acc = jnp.zeros((cout, S), jnp.float32)
        for t in range(9):
            if shifts[t] == 0:
                col = a                                   # center tap: identity
            else:
                # Cyclic lane shift (XLU) + boundary mask (lane-dense VPU mul).
                col = pltpu.roll(a, shift=shifts[t], axis=1) * masks[t:t + 1, :]
            wt = w_flat[:, t * c:(t + 1) * c]             # (Cout, c) value slice
            # Contract the c input channels of this tap.  At c == 4 this is
            # cheapest as c lane-dense exact-f32 VPU FMAs; an MXU dot would pad
            # K=4 up to the systolic tile for no gain and looser rounding.
            # TODO(synk): switch to im2col + MXU matmul (K = 9*Cin, tiles sized
            # for the MXU) once channel counts reach realistic ResNet widths.
            for ci in range(c):
                acc = acc + wt[:, ci:ci + 1] * col[ci:ci + 1, :]
        return acc

    def bn_train(y, gamma, beta):
        # Single-pass training-mode BN with folded per-channel scale/shift.
        mean = jnp.sum(y, axis=1, keepdims=True) * inv_count            # (C, 1)
        var = jnp.sum(y * y, axis=1, keepdims=True) * inv_count - mean * mean
        scale = gamma * jax.lax.rsqrt(var + EPS)
        return y * scale + (beta - mean * scale)

    # Y = relu(bn1(conv1(X)))      (conv bias folded away by the BN mean)
    y = jnp.maximum(bn_train(conv3x3(x, w1), bnp[:, 0:1], bnp[:, 1:2]), 0.0)
    # Y = bn2(conv2(Y))
    z = bn_train(conv3x3(y, w2), bnp[:, 2:3], bnp[:, 3:4])
    # conv3 is None in this config -> identity skip connection.
    out_ref[...] = jnp.maximum(z + x, 0.0)


def basic_resnet_forward(x_nchw, params):
    """NCHW in/out wrapper: relayout to lane-dense (C, N*H*W), one pallas_call."""
    N, Cin, H, W = x_nchw.shape
    Cout = params["w1"].shape[0]
    assert Cin == Cout, "identity skip (use_1x1conv=False) requires Cin == Cout"
    S = N * H * W

    # Activations: NCHW -> (C, N*H*W); lanes carry the flattened batch*spatial index.
    x2d = jnp.transpose(x_nchw, (1, 0, 2, 3)).reshape(Cin, S).astype(jnp.float32)

    # Weights: PyTorch (Cout, Cin, 3, 3) -> (Cout, 9*Cin), tap-major then channel.
    def flat_w(w):
        co, ci = w.shape[0], w.shape[1]
        return jnp.transpose(w, (0, 2, 3, 1)).reshape(co, 9 * ci).astype(jnp.float32)

    # All per-channel BN parameters packed into one tiny (Cout, 4) input.
    bn_params = jnp.stack(
        [params["gamma1"], params["beta1"], params["gamma2"], params["beta2"]],
        axis=1).astype(jnp.float32)

    # 0/1 validity masks for the 9 taps, precomputed once in the wrapper.
    idx = jnp.arange(S)
    hh = (idx // W) % H
    ww = idx % W
    mask_rows = []
    for ky in range(3):
        for kx in range(3):
            dy, dx = ky - 1, kx - 1
            mask_rows.append((hh + dy >= 0) & (hh + dy < H)
                             & (ww + dx >= 0) & (ww + dx < W))
    masks = jnp.stack(mask_rows).astype(jnp.float32)        # (9, S)

    vmem = pltpu.MemorySpace.VMEM
    kernel = functools.partial(resnet_block_kernel, W=W)
    out2d = pl.pallas_call(
        kernel,
        out_shape=jax.ShapeDtypeStruct((Cout, S), jnp.float32),
        in_specs=[pl.BlockSpec(memory_space=vmem)] * 5,
        out_specs=pl.BlockSpec(memory_space=vmem),
        # TODO(synk): at realistic ResNet sizes, tile N*H over a grid (marked
        # "parallel" so v7x's two TensorCores both work) with an accumulator /
        # two-pass BN on an "arbitrary" axis, and fuse several residual blocks
        # per pallas_call to amortize the ~0.35us per-step launch overhead.
    )(x2d, flat_w(params["w1"]), flat_w(params["w2"]), bn_params, masks)

    return out2d.reshape(Cout, N, H, W).transpose(1, 0, 2, 3)


def init_params(key, input_channels, num_channels):
    """Deterministic init mirroring PyTorch default shapes (uniform +-1/sqrt(fan_in))."""
    k1, k2, k3, k4 = jax.random.split(key, 4)
    lim1 = 1.0 / float(jnp.sqrt(input_channels * 9))
    lim2 = 1.0 / float(jnp.sqrt(num_channels * 9))
    return {
        "w1": jax.random.uniform(k1, (num_channels, input_channels, 3, 3),
                                 jnp.float32, -lim1, lim1),
        "b1": jax.random.uniform(k2, (num_channels,), jnp.float32, -lim1, lim1),
        "w2": jax.random.uniform(k3, (num_channels, num_channels, 3, 3),
                                 jnp.float32, -lim2, lim2),
        "b2": jax.random.uniform(k4, (num_channels,), jnp.float32, -lim2, lim2),
        "gamma1": jnp.ones((num_channels,), jnp.float32),
        "beta1": jnp.zeros((num_channels,), jnp.float32),
        "gamma2": jnp.ones((num_channels,), jnp.float32),
        "beta2": jnp.zeros((num_channels,), jnp.float32),
    }


def reference_forward(x_nchw, params):
    """Plain-JAX reference of the PyTorch forward (training-mode BN, with biases)."""
    def conv(x, w, b):
        y = jax.lax.conv_general_dilated(
            x, w, window_strides=(1, 1), padding=((1, 1), (1, 1)),
            dimension_numbers=("NCHW", "OIHW", "NCHW"))
        return y + b.reshape(1, -1, 1, 1)

    def bn(y, gamma, beta):
        mean = jnp.mean(y, axis=(0, 2, 3), keepdims=True)
        var = jnp.mean((y - mean) ** 2, axis=(0, 2, 3), keepdims=True)
        return ((y - mean) / jnp.sqrt(var + EPS)
                * gamma.reshape(1, -1, 1, 1) + beta.reshape(1, -1, 1, 1))

    y = jax.nn.relu(bn(conv(x_nchw, params["w1"], params["b1"]),
                       params["gamma1"], params["beta1"]))
    y = bn(conv(y, params["w2"], params["b2"]), params["gamma2"], params["beta2"])
    return jax.nn.relu(y + x_nchw)


if __name__ == "__main__":
    key = jax.random.PRNGKey(0)
    pkey, xkey = jax.random.split(key)

    input_channels = num_channels = 4
    params = init_params(pkey, input_channels, num_channels)
    x = jax.random.normal(xkey, (2, input_channels, 16, 16), dtype=jnp.float32)

    out = basic_resnet_forward(x, params)
    out = jax.block_until_ready(out)

    ref = reference_forward(x, params)
    assert out.shape == ref.shape == (2, num_channels, 16, 16)
    if not bool(jnp.allclose(out, ref, rtol=1e-4, atol=1e-4)):
        raise AssertionError("Pallas kernel does not match JAX reference")

    print("KERNEL_OK")
</pallas_src>

<mosaic_0001>
module attributes {stable_mosaic.version = 11 : i64} {
  func.func @resnet_block_kernel(%arg0: memref<4x512xf32, #tpu.memory_space<vmem>>, %arg1: memref<4x36xf32, #tpu.memory_space<vmem>>, %arg2: memref<4x36xf32, #tpu.memory_space<vmem>>, %arg3: memref<4x4xf32, #tpu.memory_space<vmem>>, %arg4: memref<9x512xf32, #tpu.memory_space<vmem>>, %arg5: memref<4x512xf32, #tpu.memory_space<vmem>>) attributes {dimension_semantics = [], scalar_prefetch = 0 : i64, scratch_operands = 0 : i64, tpu.core_type = #tpu.core_type<tc>} {
    %c0 = arith.constant 0 : index
    %c0_0 = arith.constant 0 : index
    %0 = vector.load %arg0[%c0, %c0_0] : memref<4x512xf32, #tpu.memory_space<vmem>>, vector<4x512xf32>
    %c0_1 = arith.constant 0 : index
    %c0_2 = arith.constant 0 : index
    %1 = vector.load %arg1[%c0_1, %c0_2] : memref<4x36xf32, #tpu.memory_space<vmem>>, vector<4x36xf32>
    %c0_3 = arith.constant 0 : index
    %c0_4 = arith.constant 0 : index
    %2 = vector.load %arg2[%c0_3, %c0_4] : memref<4x36xf32, #tpu.memory_space<vmem>>, vector<4x36xf32>
    %c0_5 = arith.constant 0 : index
    %c0_6 = arith.constant 0 : index
    %3 = vector.load %arg3[%c0_5, %c0_6] : memref<4x4xf32, #tpu.memory_space<vmem>>, vector<4x4xf32>
    %c0_7 = arith.constant 0 : index
    %c0_8 = arith.constant 0 : index
    %4 = vector.load %arg4[%c0_7, %c0_8] : memref<9x512xf32, #tpu.memory_space<vmem>>, vector<9x512xf32>
    %cst = arith.constant 0.000000e+00 : f32
    %5 = vector.broadcast %cst : f32 to vector<4x512xf32>
    %c17_i32 = arith.constant 17 : i32
    %6 = tpu.dynamic_rotate %0 by %c17_i32 dim 1 : vector<4x512xf32>, i32 -> vector<4x512xf32>
    %7 = vector.extract_strided_slice %4 {offsets = [0, 0], sizes = [1, 512], strides = [1, 1]} : vector<9x512xf32> to vector<1x512xf32>
    %8 = vector.broadcast %7 : vector<1x512xf32> to vector<4x512xf32>
    %9 = arith.mulf %6, %8 : vector<4x512xf32>
    %10 = vector.extract_strided_slice %1 {offsets = [0, 0], sizes = [4, 4], strides = [1, 1]} : vector<4x36xf32> to vector<4x4xf32>
    %11 = vector.extract_strided_slice %10 {offsets = [0, 0], sizes = [4, 1], strides = [1, 1]} : vector<4x4xf32> to vector<4x1xf32>
    %12 = vector.extract_strided_slice %9 {offsets = [0, 0], sizes = [1, 512], strides = [1, 1]} : vector<4x512xf32> to vector<1x512xf32>
    %13 = vector.broadcast %11 : vector<4x1xf32> to vector<4x512xf32>
    %14 = vector.broadcast %12 : vector<1x512xf32> to vector<4x512xf32>
    %15 = arith.mulf %13, %14 : vector<4x512xf32>
    %16 = arith.addf %5, %15 : vector<4x512xf32>
    %17 = vector.extract_strided_slice %10 {offsets = [0, 1], sizes = [4, 1], strides = [1, 1]} : vector<4x4xf32> to vector<4x1xf32>
    %18 = vector.extract_strided_slice %9 {offsets = [1, 0], sizes = [1, 512], strides = [1, 1]} : vector<4x512xf32> to vector<1x512xf32>
    %19 = vector.broadcast %17 : vector<4x1xf32> to vector<4x512xf32>
    %20 = vector.broadcast %18 : vector<1x512xf32> to vector<4x512xf32>
    %21 = arith.mulf %19, %20 : vector<4x512xf32>
    %22 = arith.addf %16, %21 : vector<4x512xf32>
    %23 = vector.extract_strided_slice %10 {offsets = [0, 2], sizes = [4, 1], strides = [1, 1]} : vector<4x4xf32> to vector<4x1xf32>
    %24 = vector.extract_strided_slice %9 {offsets = [2, 0], sizes = [1, 512], strides = [1, 1]} : vector<4x512xf32> to vector<1x512xf32>
    %25 = vector.broadcast %23 : vector<4x1xf32> to vector<4x512xf32>
    %26 = vector.broadcast %24 : vector<1x512xf32> to vector<4x512xf32>
    %27 = arith.mulf %25, %26 : vector<4x512xf32>
    %28 = arith.addf %22, %27 : vector<4x512xf32>
    %29 = vector.extract_strided_slice %10 {offsets = [0, 3], sizes = [4, 1], strides = [1, 1]} : vector<4x4xf32> to vector<4x1xf32>
    %30 = vector.extract_strided_slice %9 {offsets = [3, 0], sizes = [1, 512], strides = [1, 1]} : vector<4x512xf32> to vector<1x512xf32>
    %31 = vector.broadcast %29 : vector<4x1xf32> to vector<4x512xf32>
    %32 = vector.broadcast %30 : vector<1x512xf32> to vector<4x512xf32>
    %33 = arith.mulf %31, %32 : vector<4x512xf32>
    %34 = arith.addf %28, %33 : vector<4x512xf32>
    %c16_i32 = arith.constant 16 : i32
    %35 = tpu.dynamic_rotate %0 by %c16_i32 dim 1 : vector<4x512xf32>, i32 -> vector<4x512xf32>
    %36 = vector.extract_strided_slice %4 {offsets = [1, 0], sizes = [1, 512], strides = [1, 1]} : vector<9x512xf32> to vector<1x512xf32>
    %37 = vector.broadcast %36 : vector<1x512xf32> to vector<4x512xf32>
    %38 = arith.mulf %35, %37 : vector<4x512xf32>
    %39 = vector.extract_strided_slice %1 {offsets = [0, 4], sizes = [4, 4], strides = [1, 1]} : vector<4x36xf32> to vector<4x4xf32>
    %40 = vector.extract_strided_slice %39 {offsets = [0, 0], sizes = [4, 1], strides = [1, 1]} : vector<4x4xf32> to vector<4x1xf32>
    %41 = vector.extract_strided_slice %38 {offsets = [0, 0], sizes = [1, 512], strides = [1, 1]} : vector<4x512xf32> to vector<1x512xf32>
    %42 = vector.broadcast %40 : vector<4x1xf32> to vector<4x512xf32>
    %43 = vector.broadcast %41 : vector<1x512xf32> to vector<4x512xf32>
    %44 = arith.mulf %42, %43 : vector<4x512xf32>
    %45 = arith.addf %34, %44 : vector<4x512xf32>
    %46 = vector.extract_strided_slice %39 {offsets = [0, 1], sizes = [4, 1], strides = [1, 1]} : vector<4x4xf32> to vector<4x1xf32>
    %47 = vector.extract_strided_slice %38 {offsets = [1, 0], sizes = [1, 512], strides = [1, 1]} : vector<4x512xf32> to vector<1x512xf32>
    %48 = vector.broadcast %46 : vector<4x1xf32> to vector<4x512xf32>
    %49 = vector.broadcast %47 : vector<1x512xf32> to vector<4x512xf32>
    %50 = arith.mulf %48, %49 : vector<4x512xf32>
    %51 = arith.addf %45, %50 : vector<4x512xf32>
    %52 = vector.extract_strided_slice %39 {offsets = [0, 2], sizes = [4, 1], strides = [1, 1]} : vector<4x4xf32> to vector<4x1xf32>
    %53 = vector.extract_strided_slice %38 {offsets = [2, 0], sizes = [1, 512], strides = [1, 1]} : vector<4x512xf32> to vector<1x512xf32>
    %54 = vector.broadcast %52 : vector<4x1xf32> to vector<4x512xf32>
    %55 = vector.broadcast %53 : vector<1x512xf32> to vector<4x512xf32>
    %56 = arith.mulf %54, %55 : vector<4x512xf32>
    %57 = arith.addf %51, %56 : vector<4x512xf32>
    %58 = vector.extract_strided_slice %39 {offsets = [0, 3], sizes = [4, 1], strides = [1, 1]} : vector<4x4xf32> to vector<4x1xf32>
    %59 = vector.extract_strided_slice %38 {offsets = [3, 0], sizes = [1, 512], strides = [1, 1]} : vector<4x512xf32> to vector<1x512xf32>
    %60 = vector.broadcast %58 : vector<4x1xf32> to vector<4x512xf32>
    %61 = vector.broadcast %59 : vector<1x512xf32> to vector<4x512xf32>
    %62 = arith.mulf %60, %61 : vector<4x512xf32>
    %63 = arith.addf %57, %62 : vector<4x512xf32>
    %c15_i32 = arith.constant 15 : i32
    %64 = tpu.dynamic_rotate %0 by %c15_i32 dim 1 : vector<4x512xf32>, i32 -> vector<4x512xf32>
    %65 = vector.extract_strided_slice %4 {offsets = [2, 0], sizes = [1, 512], strides = [1, 1]} : vector<9x512xf32> to vector<1x512xf32>
    %66 = vector.broadcast %65 : vector<1x512xf32> to vector<4x512xf32>
    %67 = arith.mulf %64, %66 : vector<4x512xf32>
    %68 = vector.extract_strided_slice %1 {offsets = [0, 8], sizes = [4, 4], strides = [1, 1]} : vector<4x36xf32> to vector<4x4xf32>
    %69 = vector.extract_strided_slice %68 {offsets = [0, 0], sizes = [4, 1], strides = [1, 1]} : vector<4x4xf32> to vector<4x1xf32>
    %70 = vector.extract_strided_slice %67 {offsets = [0, 0], sizes = [1, 512], strides = [1, 1]} : vector<4x512xf32> to vector<1x512xf32>
    %71 = vector.broadcast %69 : vector<4x1xf32> to vector<4x512xf32>
    %72 = vector.broadcast %70 : vector<1x512xf32> to vector<4x512xf32>
    %73 = arith.mulf %71, %72 : vector<4x512xf32>
    %74 = arith.addf %63, %73 : vector<4x512xf32>
    %75 = vector.extract_strided_slice %68 {offsets = [0, 1], sizes = [4, 1], strides = [1, 1]} : vector<4x4xf32> to vector<4x1xf32>
    %76 = vector.extract_strided_slice %67 {offsets = [1, 0], sizes = [1, 512], strides = [1, 1]} : vector<4x512xf32> to vector<1x512xf32>
    %77 = vector.broadcast %75 : vector<4x1xf32> to vector<4x512xf32>
    %78 = vector.broadcast %76 : vector<1x512xf32> to vector<4x512xf32>
    %79 = arith.mulf %77, %78 : vector<4x512xf32>
    %80 = arith.addf %74, %79 : vector<4x512xf32>
    %81 = vector.extract_strided_slice %68 {offsets = [0, 2], sizes = [4, 1], strides = [1, 1]} : vector<4x4xf32> to vector<4x1xf32>
    %82 = vector.extract_strided_slice %67 {offsets = [2, 0], sizes = [1, 512], strides = [1, 1]} : vector<4x512xf32> to vector<1x512xf32>
    %83 = vector.broadcast %81 : vector<4x1xf32> to vector<4x512xf32>
    %84 = vector.broadcast %82 : vector<1x512xf32> to vector<4x512xf32>
    %85 = arith.mulf %83, %84 : vector<4x512xf32>
    %86 = arith.addf %80, %85 : vector<4x512xf32>
    %87 = vector.extract_strided_slice %68 {offsets = [0, 3], sizes = [4, 1], strides = [1, 1]} : vector<4x4xf32> to vector<4x1xf32>
    %88 = vector.extract_strided_slice %67 {offsets = [3, 0], sizes = [1, 512], strides = [1, 1]} : vector<4x512xf32> to vector<1x512xf32>
    %89 = vector.broadcast %87 : vector<4x1xf32> to vector<4x512xf32>
    %90 = vector.broadcast %88 : vector<1x512xf32> to vector<4x512xf32>
    %91 = arith.mulf %89, %90 : vector<4x512xf32>
    %92 = arith.addf %86, %91 : vector<4x512xf32>
    %c1_i32 = arith.constant 1 : i32
    %93 = tpu.dynamic_rotate %0 by %c1_i32 dim 1 : vector<4x512xf32>, i32 -> vector<4x512xf32>
    %94 = vector.extract_strided_slice %4 {offsets = [3, 0], sizes = [1, 512], strides = [1, 1]} : vector<9x512xf32> to vector<1x512xf32>
    %95 = vector.broadcast %94 : vector<1x512xf32> to vector<4x512xf32>
    %96 = arith.mulf %93, %95 : vector<4x512xf32>
    %97 = vector.extract_strided_slice %1 {offsets = [0, 12], sizes = [4, 4], strides = [1, 1]} : vector<4x36xf32> to vector<4x4xf32>
    %98 = vector.extract_strided_slice %97 {offsets = [0, 0], sizes = [4, 1], strides = [1, 1]} : vector<4x4xf32> to vector<4x1xf32>
    %99 = vector.extract_strided_slice %96 {offsets = [0, 0], sizes = [1, 512], strides = [1, 1]} : vector<4x512xf32> to vector<1x512xf32>
    %100 = vector.broadcast %98 : vector<4x1xf32> to vector<4x512xf32>
    %101 = vector.broadcast %99 : vector<1x512xf32> to vector<4x512xf32>
    %102 = arith.mulf %100, %101 : vector<4x512xf32>
    %103 = arith.addf %92, %102 : vector<4x512xf32>
    %104 = vector.extract_strided_slice %97 {offsets = [0, 1], sizes = [4, 1], strides = [1, 1]} : vector<4x4xf32> to vector<4x1xf32>
    %105 = vector.extract_strided_slice %96 {offsets = [1, 0], sizes = [1, 512], strides = [1, 1]} : vector<4x512xf32> to vector<1x512xf32>
    %106 = vector.broadcast %104 : vector<4x1xf32> to vector<4x512xf32>
    %107 = vector.broadcast %105 : vector<1x512xf32> to vector<4x512xf32>
    %108 = arith.mulf %106, %107 : vector<4x512xf32>
    %109 = arith.addf %103, %108 : vector<4x512xf32>
    %110 = vector.extract_strided_slice %97 {offsets = [0, 2], sizes = [4, 1], strides = [1, 1]} : vector<4x4xf32> to vector<4x1xf32>
    %111 = vector.extract_strided_slice %96 {offsets = [2, 0], sizes = [1, 512], strides = [1, 1]} : vector<4x512xf32> to vector<1x512xf32>
    %112 = vector.broadcast %110 : vector<4x1xf32> to vector<4x512xf32>
    %113 = vector.broadcast %111 : vector<1x512xf32> to vector<4x512xf32>
    %114 = arith.mulf %112, %113 : vector<4x512xf32>
    %115 = arith.addf %109, %114 : vector<4x512xf32>
    %116 = vector.extract_strided_slice %97 {offsets = [0, 3], sizes = [4, 1], strides = [1, 1]} : vector<4x4xf32> to vector<4x1xf32>
    %117 = vector.extract_strided_slice %96 {offsets = [3, 0], sizes = [1, 512], strides = [1, 1]} : vector<4x512xf32> to vector<1x512xf32>
    %118 = vector.broadcast %116 : vector<4x1xf32> to vector<4x512xf32>
    %119 = vector.broadcast %117 : vector<1x512xf32> to vector<4x512xf32>
    %120 = arith.mulf %118, %119 : vector<4x512xf32>
    %121 = arith.addf %115, %120 : vector<4x512xf32>
    %122 = vector.extract_strided_slice %1 {offsets = [0, 16], sizes = [4, 4], strides = [1, 1]} : vector<4x36xf32> to vector<4x4xf32>
    %123 = vector.extract_strided_slice %122 {offsets = [0, 0], sizes = [4, 1], strides = [1, 1]} : vector<4x4xf32> to vector<4x1xf32>
    %124 = vector.extract_strided_slice %0 {offsets = [0, 0], sizes = [1, 512], strides = [1, 1]} : vector<4x512xf32> to vector<1x512xf32>
    %125 = vector.broadcast %123 : vector<4x1xf32> to vector<4x512xf32>
    %126 = vector.broadcast %124 : vector<1x512xf32> to vector<4x512xf32>
    %127 = arith.mulf %125, %126 : vector<4x512xf32>
    %128 = arith.addf %121, %127 : vector<4x512xf32>
    %129 = vector.extract_strided_slice %122 {offsets = [0, 1], sizes = [4, 1], strides = [1, 1]} : vector<4x4xf32> to vector<4x1xf32>
    %130 = vector.extract_strided_slice %0 {offsets = [1, 0], sizes = [1, 512], strides = [1, 1]} : vector<4x512xf32> to vector<1x512xf32>
    %131 = vector.broadcast %129 : vector<4x1xf32> to vector<4x512xf32>
    %132 = vector.broadcast %130 : vector<1x512xf32> to vector<4x512xf32>
    %133 = arith.mulf %131, %132 : vector<4x512xf32>
    %134 = arith.addf %128, %133 : vector<4x512xf32>
    %135 = vector.extract_strided_slice %122 {offsets = [0, 2], sizes = [4, 1], strides = [1, 1]} : vector<4x4xf32> to vector<4x1xf32>
    %136 = vector.extract_strided_slice %0 {offsets = [2, 0], sizes = [1, 512], strides = [1, 1]} : vector<4x512xf32> to vector<1x512xf32>
    %137 = vector.broadcast %135 : vector<4x1xf32> to vector<4x512xf32>
    %138 = vector.broadcast %136 : vector<1x512xf32> to vector<4x512xf32>
    %139 = arith.mulf %137, %138 : vector<4x512xf32>
    %140 = arith.addf %134, %139 : vector<4x512xf32>
    %141 = vector.extract_strided_slice %122 {offsets = [0, 3], sizes = [4, 1], strides = [1, 1]} : vector<4x4xf32> to vector<4x1xf32>
    %142 = vector.extract_strided_slice %0 {offsets = [3, 0], sizes = [1, 512], strides = [1, 1]} : vector<4x512xf32> to vector<1x512xf32>
    %143 = vector.broadcast %141 : vector<4x1xf32> to vector<4x512xf32>
    %144 = vector.broadcast %142 : vector<1x512xf32> to vector<4x512xf32>
    %145 = arith.mulf %143, %144 : vector<4x512xf32>
    %146 = arith.addf %140, %145 : vector<4x512xf32>
    %c511_i32 = arith.constant 511 : i32
    %147 = tpu.dynamic_rotate %0 by %c511_i32 dim 1 : vector<4x512xf32>, i32 -> vector<4x512xf32>
    %148 = vector.extract_strided_slice %4 {offsets = [5, 0], sizes = [1, 512], strides = [1, 1]} : vector<9x512xf32> to vector<1x512xf32>
    %149 = vector.broadcast %148 : vector<1x512xf32> to vector<4x512xf32>
    %150 = arith.mulf %147, %149 : vector<4x512xf32>
    %151 = vector.extract_strided_slice %1 {offsets = [0, 20], sizes = [4, 4], strides = [1, 1]} : vector<4x36xf32> to vector<4x4xf32>
    %152 = vector.extract_strided_slice %151 {offsets = [0, 0], sizes = [4, 1], strides = [1, 1]} : vector<4x4xf32> to vector<4x1xf32>
    %153 = vector.extract_strided_slice %150 {offsets = [0, 0], sizes = [1, 512], strides = [1, 1]} : vector<4x512xf32> to vector<1x512xf32>
    %154 = vector.broadcast %152 : vector<4x1xf32> to vector<4x512xf32>
    %155 = vector.broadcast %153 : vector<1x512xf32> to vector<4x512xf32>
    %156 = arith.mulf %154, %155 : vector<4x512xf32>
    %157 = arith.addf %146, %156 : vector<4x512xf32>
    %158 = vector.extract_strided_slice %151 {offsets = [0, 1], sizes = [4, 1], strides = [1, 1]} : vector<4x4xf32> to vector<4x1xf32>
    %159 = vector.extract_strided_slice %150 {offsets = [1, 0], sizes = [1, 512], strides = [1, 1]} : vector<4x512xf32> to vector<1x512xf32>
    %160 = vector.broadcast %158 : vector<4x1xf32> to vector<4x512xf32>
    %161 = vector.broadcast %159 : vector<1x512xf32> to vector<4x512xf32>
    %162 = arith.mulf %160, %161 : vector<4x512xf32>
    %163 = arith.addf %157, %162 : vector<4x512xf32>
    %164 = vector.extract_strided_slice %151 {offsets = [0, 2], sizes = [4, 1], strides = [1, 1]} : vector<4x4xf32> to vector<4x1xf32>
    %165 = vector.extract_strided_slice %150 {offsets = [2, 0], sizes = [1, 512], strides = [1, 1]} : vector<4x512xf32> to vector<1x512xf32>
    %166 = vector.broadcast %164 : vector<4x1xf32> to vector<4x512xf32>
    %167 = vector.broadcast %165 : vector<1x512xf32> to vector<4x512xf32>
    %168 = arith.mulf %166, %167 : vector<4x512xf32>
    %169 = arith.addf %163, %168 : vector<4x512xf32>
    %170 = vector.extract_strided_slice %151 {offsets = [0, 3], sizes = [4, 1], strides = [1, 1]} : vector<4x4xf32> to vector<4x1xf32>
    %171 = vector.extract_strided_slice %150 {offsets = [3, 0], sizes = [1, 512], strides = [1, 1]} : vector<4x512xf32> to vector<1x512xf32>
    %172 = vector.broadcast %170 : vector<4x1xf32> to vector<4x512xf32>
    %173 = vector.broadcast %171 : vector<1x512xf32> to vector<4x512xf32>
    %174 = arith.mulf %172, %173 : vector<4x512xf32>
    %175 = arith.addf %169, %174 : vector<4x512xf32>
    %c497_i32 = arith.constant 497 : i32
    %176 = tpu.dynamic_rotate %0 by %c497_i32 dim 1 : vector<4x512xf32>, i32 -> vector<4x512xf32>
    %177 = vector.extract_strided_slice %4 {offsets = [6, 0], sizes = [1, 512], strides = [1, 1]} : vector<9x512xf32> to vector<1x512xf32>
    %178 = vector.broadcast %177 : vector<1x512xf32> to vector<4x512xf32>
    %179 = arith.mulf %176, %178 : vector<4x512xf32>
    %180 = vector.extract_strided_slice %1 {offsets = [0, 24], sizes = [4, 4], strides = [1, 1]} : vector<4x36xf32> to vector<4x4xf32>
    %181 = vector.extract_strided_slice %180 {offsets = [0, 0], sizes = [4, 1], strides = [1, 1]} : vector<4x4xf32> to vector<4x1xf32>
    %182 = vector.extract_strided_slice %179 {offsets = [0, 0], sizes = [1, 512], strides = [1, 1]} : vector<4x512xf32> to vector<1x512xf32>
    %183 = vector.broadcast %181 : vector<4x1xf32> to vector<4x512xf32>
    %184 = vector.broadcast %182 : vector<1x512xf32> to vector<4x512xf32>
    %185 = arith.mulf %183, %184 : vector<4x512xf32>
    %186 = arith.addf %175, %185 : vector<4x512xf32>
    %187 = vector.extract_strided_slice %180 {offsets = [0, 1], sizes = [4, 1], strides = [1, 1]} : vector<4x4xf32> to vector<4x1xf32>
    %188 = vector.extract_strided_slice %179 {offsets = [1, 0], sizes = [1, 512], strides = [1, 1]} : vector<4x512xf32> to vector<1x512xf32>
    %189 = vector.broadcast %187 : vector<4x1xf32> to vector<4x512xf32>
    %190 = vector.broadcast %188 : vector<1x512xf32> to vector<4x512xf32>
    %191 = arith.mulf %189, %190 : vector<4x512xf32>
    %192 = arith.addf %186, %191 : vector<4x512xf32>
    %193 = vector.extract_strided_slice %180 {offsets = [0, 2], sizes = [4, 1], strides = [1, 1]} : vector<4x4xf32> to vector<4x1xf32>
    %194 = vector.extract_strided_slice %179 {offsets = [2, 0], sizes = [1, 512], strides = [1, 1]} : vector<4x512xf32> to vector<1x512xf32>
    %195 = vector.broadcast %193 : vector<4x1xf32> to vector<4x512xf32>
    %196 = vector.broadcast %194 : vector<1x512xf32> to vector<4x512xf32>
    %197 = arith.mulf %195, %196 : vector<4x512xf32>
    %198 = arith.addf %192, %197 : vector<4x512xf32>
    %199 = vector.extract_strided_slice %180 {offsets = [0, 3], sizes = [4, 1], strides = [1, 1]} : vector<4x4xf32> to vector<4x1xf32>
    %200 = vector.extract_strided_slice %179 {offsets = [3, 0], sizes = [1, 512], strides = [1, 1]} : vector<4x512xf32> to vector<1x512xf32>
    %201 = vector.broadcast %199 : vector<4x1xf32> to vector<4x512xf32>
    %202 = vector.broadcast %200 : vector<1x512xf32> to vector<4x512xf32>
    %203 = arith.mulf %201, %202 : vector<4x512xf32>
    %204 = arith.addf %198, %203 : vector<4x512xf32>
    %c496_i32 = arith.constant 496 : i32
    %205 = tpu.dynamic_rotate %0 by %c496_i32 dim 1 : vector<4x512xf32>, i32 -> vector<4x512xf32>
    %206 = vector.extract_strided_slice %4 {offsets = [7, 0], sizes = [1, 512], strides = [1, 1]} : vector<9x512xf32> to vector<1x512xf32>
    %207 = vector.broadcast %206 : vector<1x512xf32> to vector<4x512xf32>
    %208 = arith.mulf %205, %207 : vector<4x512xf32>
    %209 = vector.extract_strided_slice %1 {offsets = [0, 28], sizes = [4, 4], strides = [1, 1]} : vector<4x36xf32> to vector<4x4xf32>
    %210 = vector.extract_strided_slice %209 {offsets = [0, 0], sizes = [4, 1], strides = [1, 1]} : vector<4x4xf32> to vector<4x1xf32>
    %211 = vector.extract_strided_slice %208 {offsets = [0, 0], sizes = [1, 512], strides = [1, 1]} : vector<4x512xf32> to vector<1x512xf32>
    %212 = vector.broadcast %210 : vector<4x1xf32> to vector<4x512xf32>
    %213 = vector.broadcast %211 : vector<1x512xf32> to vector<4x512xf32>
    %214 = arith.mulf %212, %213 : vector<4x512xf32>
    %215 = arith.addf %204, %214 : vector<4x512xf32>
    %216 = vector.extract_strided_slice %209 {offsets = [0, 1], sizes = [4, 1], strides = [1, 1]} : vector<4x4xf32> to vector<4x1xf32>
    %217 = vector.extract_strided_slice %208 {offsets = [1, 0], sizes = [1, 512], strides = [1, 1]} : vector<4x512xf32> to vector<1x512xf32>
    %218 = vector.broadcast %216 : vector<4x1xf32> to vector<4x512xf32>
    %219 = vector.broadcast %217 : vector<1x512xf32> to vector<4x512xf32>
    %220 = arith.mulf %218, %219 : vector<4x512xf32>
    %221 = arith.addf %215, %220 : vector<4x512xf32>
    %222 = vector.extract_strided_slice %209 {offsets = [0, 2], sizes = [4, 1], strides = [1, 1]} : vector<4x4xf32> to vector<4x1xf32>
    %223 = vector.extract_strided_slice %208 {offsets = [2, 0], sizes = [1, 512], strides = [1, 1]} : vector<4x512xf32> to vector<1x512xf32>
    %224 = vector.broadcast %222 : vector<4x1xf32> to vector<4x512xf32>
    %225 = vector.broadcast %223 : vector<1x512xf32> to vector<4x512xf32>
    %226 = arith.mulf %224, %225 : vector<4x512xf32>
    %227 = arith.addf %221, %226 : vector<4x512xf32>
    %228 = vector.extract_strided_slice %209 {offsets = [0, 3], sizes = [4, 1], strides = [1, 1]} : vector<4x4xf32> to vector<4x1xf32>
    %229 = vector.extract_strided_slice %208 {offsets = [3, 0], sizes = [1, 512], strides = [1, 1]} : vector<4x512xf32> to vector<1x512xf32>
    %230 = vector.broadcast %228 : vector<4x1xf32> to vector<4x512xf32>
    %231 = vector.broadcast %229 : vector<1x512xf32> to vector<4x512xf32>
    %232 = arith.mulf %230, %231 : vector<4x512xf32>
    %233 = arith.addf %227, %232 : vector<4x512xf32>
    %c495_i32 = arith.constant 495 : i32
    %234 = tpu.dynamic_rotate %0 by %c495_i32 dim 1 : vector<4x512xf32>, i32 -> vector<4x512xf32>
    %235 = vector.extract_strided_slice %4 {offsets = [8, 0], sizes = [1, 512], strides = [1, 1]} : vector<9x512xf32> to vector<1x512xf32>
    %236 = vector.broadcast %235 : vector<1x512xf32> to vector<4x512xf32>
    %237 = arith.mulf %234, %236 : vector<4x512xf32>
    %238 = vector.extract_strided_slice %1 {offsets = [0, 32], sizes = [4, 4], strides = [1, 1]} : vector<4x36xf32> to vector<4x4xf32>
    %239 = vector.extract_strided_slice %238 {offsets = [0, 0], sizes = [4, 1], strides = [1, 1]} : vector<4x4xf32> to vector<4x1xf32>
    %240 = vector.extract_strided_slice %237 {offsets = [0, 0], sizes = [1, 512], strides = [1, 1]} : vector<4x512xf32> to vector<1x512xf32>
    %241 = vector.broadcast %239 : vector<4x1xf32> to vector<4x512xf32>
    %242 = vector.broadcast %240 : vector<1x512xf32> to vector<4x512xf32>
    %243 = arith.mulf %241, %242 : vector<4x512xf32>
    %244 = arith.addf %233, %243 : vector<4x512xf32>
    %245 = vector.extract_strided_slice %238 {offsets = [0, 1], sizes = [4, 1], strides = [1, 1]} : vector<4x4xf32> to vector<4x1xf32>
    %246 = vector.extract_strided_slice %237 {offsets = [1, 0], sizes = [1, 512], strides = [1, 1]} : vector<4x512xf32> to vector<1x512xf32>
    %247 = vector.broadcast %245 : vector<4x1xf32> to vector<4x512xf32>
    %248 = vector.broadcast %246 : vector<1x512xf32> to vector<4x512xf32>
    %249 = arith.mulf %247, %248 : vector<4x512xf32>
    %250 = arith.addf %244, %249 : vector<4x512xf32>
    %251 = vector.extract_strided_slice %238 {offsets = [0, 2], sizes = [4, 1], strides = [1, 1]} : vector<4x4xf32> to vector<4x1xf32>
    %252 = vector.extract_strided_slice %237 {offsets = [2, 0], sizes = [1, 512], strides = [1, 1]} : vector<4x512xf32> to vector<1x512xf32>
    %253 = vector.broadcast %251 : vector<4x1xf32> to vector<4x512xf32>
    %254 = vector.broadcast %252 : vector<1x512xf32> to vector<4x512xf32>
    %255 = arith.mulf %253, %254 : vector<4x512xf32>
    %256 = arith.addf %250, %255 : vector<4x512xf32>
    %257 = vector.extract_strided_slice %238 {offsets = [0, 3], sizes = [4, 1], strides = [1, 1]} : vector<4x4xf32> to vector<4x1xf32>
    %258 = vector.extract_strided_slice %237 {offsets = [3, 0], sizes = [1, 512], strides = [1, 1]} : vector<4x512xf32> to vector<1x512xf32>
    %259 = vector.broadcast %257 : vector<4x1xf32> to vector<4x512xf32>
    %260 = vector.broadcast %258 : vector<1x512xf32> to vector<4x512xf32>
    %261 = arith.mulf %259, %260 : vector<4x512xf32>
    %262 = arith.addf %256, %261 : vector<4x512xf32>
    %263 = vector.extract_strided_slice %3 {offsets = [0, 0], sizes = [4, 1], strides = [1, 1]} : vector<4x4xf32> to vector<4x1xf32>
    %264 = vector.extract_strided_slice %3 {offsets = [0, 1], sizes = [4, 1], strides = [1, 1]} : vector<4x4xf32> to vector<4x1xf32>
    %cst_9 = arith.constant dense<0.000000e+00> : vector<4xf32>
    %265 = vector.multi_reduction <add>, %262, %cst_9 [1] : vector<4x512xf32> to vector<4xf32>
    %266 = vector.shape_cast %265 : vector<4xf32> to vector<4x1xf32>
    %cst_10 = arith.constant 0.001953125 : f32
    %267 = vector.broadcast %cst_10 : f32 to vector<4x1xf32>
    %268 = arith.mulf %266, %267 : vector<4x1xf32>
    %269 = arith.mulf %262, %262 : vector<4x512xf32>
    %cst_11 = arith.constant dense<0.000000e+00> : vector<4xf32>
    %270 = vector.multi_reduction <add>, %269, %cst_11 [1] : vector<4x512xf32> to vector<4xf32>
    %271 = vector.shape_cast %270 : vector<4xf32> to vector<4x1xf32>
    %cst_12 = arith.constant 0.001953125 : f32
    %272 = vector.broadcast %cst_12 : f32 to vector<4x1xf32>
    %273 = arith.mulf %271, %272 : vector<4x1xf32>
    %274 = arith.mulf %268, %268 : vector<4x1xf32>
    %275 = arith.subf %273, %274 : vector<4x1xf32>
    %cst_13 = arith.constant 9.99999974E-6 : f32
    %276 = vector.broadcast %cst_13 : f32 to vector<4x1xf32>
    %277 = arith.addf %275, %276 : vector<4x1xf32>
    %278 = math.rsqrt %277 : vector<4x1xf32>
    %279 = arith.mulf %263, %278 : vector<4x1xf32>
    %280 = vector.broadcast %279 : vector<4x1xf32> to vector<4x512xf32>
    %281 = arith.mulf %262, %280 : vector<4x512xf32>
    %282 = arith.mulf %268, %279 : vector<4x1xf32>
    %283 = arith.subf %264, %282 : vector<4x1xf32>
    %284 = vector.broadcast %283 : vector<4x1xf32> to vector<4x512xf32>
    %285 = arith.addf %281, %284 : vector<4x512xf32>
    %cst_14 = arith.constant 0.000000e+00 : f32
    %286 = vector.broadcast %cst_14 : f32 to vector<4x512xf32>
    %287 = arith.maximumf %285, %286 : vector<4x512xf32>
    %cst_15 = arith.constant 0.000000e+00 : f32
    %288 = vector.broadcast %cst_15 : f32 to vector<4x512xf32>
    %c17_i32_16 = arith.constant 17 : i32
    %289 = tpu.dynamic_rotate %287 by %c17_i32_16 dim 1 : vector<4x512xf32>, i32 -> vector<4x512xf32>
    %290 = vector.extract_strided_slice %4 {offsets = [0, 0], sizes = [1, 512], strides = [1, 1]} : vector<9x512xf32> to vector<1x512xf32>
    %291 = vector.broadcast %290 : vector<1x512xf32> to vector<4x512xf32>
    %292 = arith.mulf %289, %291 : vector<4x512xf32>
    %293 = vector.extract_strided_slice %2 {offsets = [0, 0], sizes = [4, 4], strides = [1, 1]} : vector<4x36xf32> to vector<4x4xf32>
    %294 = vector.extract_strided_slice %293 {offsets = [0, 0], sizes = [4, 1], strides = [1, 1]} : vector<4x4xf32> to vector<4x1xf32>
    %295 = vector.extract_strided_slice %292 {offsets = [0, 0], sizes = [1, 512], strides = [1, 1]} : vector<4x512xf32> to vector<1x512xf32>
    %296 = vector.broadcast %294 : vector<4x1xf32> to vector<4x512xf32>
    %297 = vector.broadcast %295 : vector<1x512xf32> to vector<4x512xf32>
    %298 = arith.mulf %296, %297 : vector<4x512xf32>
    %299 = arith.addf %288, %298 : vector<4x512xf32>
    %300 = vector.extract_strided_slice %293 {offsets = [0, 1], sizes = [4, 1], strides = [1, 1]} : vector<4x4xf32> to vector<4x1xf32>
    %301 = vector.extract_strided_slice %292 {offsets = [1, 0], sizes = [1, 512], strides = [1, 1]} : vector<4x512xf32> to vector<1x512xf32>
    %302 = vector.broadcast %300 : vector<4x1xf32> to vector<4x512xf32>
    %303 = vector.broadcast %301 : vector<1x512xf32> to vector<4x512xf32>
    %304 = arith.mulf %302, %303 : vector<4x512xf32>
    %305 = arith.addf %299, %304 : vector<4x512xf32>
    %306 = vector.extract_strided_slice %293 {offsets = [0, 2], sizes = [4, 1], strides = [1, 1]} : vector<4x4xf32> to vector<4x1xf32>
    %307 = vector.extract_strided_slice %292 {offsets = [2, 0], sizes = [1, 512], strides = [1, 1]} : vector<4x512xf32> to vector<1x512xf32>
    %308 = vector.broadcast %306 : vector<4x1xf32> to vector<4x512xf32>
    %309 = vector.broadcast %307 : vector<1x512xf32> to vector<4x512xf32>
    %310 = arith.mulf %308, %309 : vector<4x512xf32>
    %311 = arith.addf %305, %310 : vector<4x512xf32>
    %312 = vector.extract_strided_slice %293 {offsets = [0, 3], sizes = [4, 1], strides = [1, 1]} : vector<4x4xf32> to vector<4x1xf32>
    %313 = vector.extract_strided_slice %292 {offsets = [3, 0], sizes = [1, 512], strides = [1, 1]} : vector<4x512xf32> to vector<1x512xf32>
    %314 = vector.broadcast %312 : vector<4x1xf32> to vector<4x512xf32>
    %315 = vector.broadcast %313 : vector<1x512xf32> to vector<4x512xf32>
    %316 = arith.mulf %314, %315 : vector<4x512xf32>
    %317 = arith.addf %311, %316 : vector<4x512xf32>
    %c16_i32_17 = arith.constant 16 : i32
    %318 = tpu.dynamic_rotate %287 by %c16_i32_17 dim 1 : vector<4x512xf32>, i32 -> vector<4x512xf32>
    %319 = vector.extract_strided_slice %4 {offsets = [1, 0], sizes = [1, 512], strides = [1, 1]} : vector<9x512xf32> to vector<1x512xf32>
    %320 = vector.broadcast %319 : vector<1x512xf32> to vector<4x512xf32>
    %321 = arith.mulf %318, %320 : vector<4x512xf32>
    %322 = vector.extract_strided_slice %2 {offsets = [0, 4], sizes = [4, 4], strides = [1, 1]} : vector<4x36xf32> to vector<4x4xf32>
    %323 = vector.extract_strided_slice %322 {offsets = [0, 0], sizes = [4, 1], strides = [1, 1]} : vector<4x4xf32> to vector<4x1xf32>
    %324 = vector.extract_strided_slice %321 {offsets = [0, 0], sizes = [1, 512], strides = [1, 1]} : vector<4x512xf32> to vector<1x512xf32>
    %325 = vector.broadcast %323 : vector<4x1xf32> to vector<4x512xf32>
    %326 = vector.broadcast %324 : vector<1x512xf32> to vector<4x512xf32>
    %327 = arith.mulf %325, %326 : vector<4x512xf32>
    %328 = arith.addf %317, %327 : vector<4x512xf32>
    %329 = vector.extract_strided_slice %322 {offsets = [0, 1], sizes = [4, 1], strides = [1, 1]} : vector<4x4xf32> to vector<4x1xf32>
    %330 = vector.extract_strided_slice %321 {offsets = [1, 0], sizes = [1, 512], strides = [1, 1]} : vector<4x512xf32> to vector<1x512xf32>
    %331 = vector.broadcast %329 : vector<4x1xf32> to vector<4x512xf32>
    %332 = vector.broadcast %330 : vector<1x512xf32> to vector<4x512xf32>
    %333 = arith.mulf %331, %332 : vector<4x512xf32>
    %334 = arith.addf %328, %333 : vector<4x512xf32>
    %335 = vector.extract_strided_slice %322 {offsets = [0, 2], sizes = [4, 1], strides = [1, 1]} : vector<4x4xf32> to vector<4x1xf32>
    %336 = vector.extract_strided_slice %321 {offsets = [2, 0], sizes = [1, 512], strides = [1, 1]} : vector<4x512xf32> to vector<1x512xf32>
    %337 = vector.broadcast %335 : vector<4x1xf32> to vector<4x512xf32>
    %338 = vector.broadcast %336 : vector<1x512xf32> to vector<4x512xf32>
    %339 = arith.mulf %337, %338 : vector<4x512xf32>
    %340 = arith.addf %334, %339 : vector<4x512xf32>
    %341 = vector.extract_strided_slice %322 {offsets = [0, 3], sizes = [4, 1], strides = [1, 1]} : vector<4x4xf32> to vector<4x1xf32>
    %342 = vector.extract_strided_slice %321 {offsets = [3, 0], sizes = [1, 512], strides = [1, 1]} : vector<4x512xf32> to vector<1x512xf32>
    %343 = vector.broadcast %341 : vector<4x1xf32> to vector<4x512xf32>
    %344 = vector.broadcast %342 : vector<1x512xf32> to vector<4x512xf32>
    %345 = arith.mulf %343, %344 : vector<4x512xf32>
    %346 = arith.addf %340, %345 : vector<4x512xf32>
    %c15_i32_18 = arith.constant 15 : i32
    %347 = tpu.dynamic_rotate %287 by %c15_i32_18 dim 1 : vector<4x512xf32>, i32 -> vector<4x512xf32>
    %348 = vector.extract_strided_slice %4 {offsets = [2, 0], sizes = [1, 512], strides = [1, 1]} : vector<9x512xf32> to vector<1x512xf32>
    %349 = vector.broadcast %348 : vector<1x512xf32> to vector<4x512xf32>
    %350 = arith.mulf %347, %349 : vector<4x512xf32>
    %351 = vector.extract_strided_slice %2 {offsets = [0, 8], sizes = [4, 4], strides = [1, 1]} : vector<4x36xf32> to vector<4x4xf32>
    %352 = vector.extract_strided_slice %351 {offsets = [0, 0], sizes = [4, 1], strides = [1, 1]} : vector<4x4xf32> to vector<4x1xf32>
    %353 = vector.extract_strided_slice %350 {offsets = [0, 0], sizes = [1, 512], strides = [1, 1]} : vector<4x512xf32> to vector<1x512xf32>
    %354 = vector.broadcast %352 : vector<4x1xf32> to vector<4x512xf32>
    %355 = vector.broadcast %353 : vector<1x512xf32> to vector<4x512xf32>
    %356 = arith.mulf %354, %355 : vector<4x512xf32>
    %357 = arith.addf %346, %356 : vector<4x512xf32>
    %358 = vector.extract_strided_slice %351 {offsets = [0, 1], sizes = [4, 1], strides = [1, 1]} : vector<4x4xf32> to vector<4x1xf32>
    %359 = vector.extract_strided_slice %350 {offsets = [1, 0], sizes = [1, 512], strides = [1, 1]} : vector<4x512xf32> to vector<1x512xf32>
    %360 = vector.broadcast %358 : vector<4x1xf32> to vector<4x512xf32>
    %361 = vector.broadcast %359 : vector<1x512xf32> to vector<4x512xf32>
    %362 = arith.mulf %360, %361 : vector<4x512xf32>
    %363 = arith.addf %357, %362 : vector<4x512xf32>
    %364 = vector.extract_strided_slice %351 {offsets = [0, 2], sizes = [4, 1], strides = [1, 1]} : vector<4x4xf32> to vector<4x1xf32>
    %365 = vector.extract_strided_slice %350 {offsets = [2, 0], sizes = [1, 512], strides = [1, 1]} : vector<4x512xf32> to vector<1x512xf32>
    %366 = vector.broadcast %364 : vector<4x1xf32> to vector<4x512xf32>
    %367 = vector.broadcast %365 : vector<1x512xf32> to vector<4x512xf32>
    %368 = arith.mulf %366, %367 : vector<4x512xf32>
    %369 = arith.addf %363, %368 : vector<4x512xf32>
    %370 = vector.extract_strided_slice %351 {offsets = [0, 3], sizes = [4, 1], strides = [1, 1]} : vector<4x4xf32> to vector<4x1xf32>
    %371 = vector.extract_strided_slice %350 {offsets = [3, 0], sizes = [1, 512], strides = [1, 1]} : vector<4x512xf32> to vector<1x512xf32>
    %372 = vector.broadcast %370 : vector<4x1xf32> to vector<4x512xf32>
    %373 = vector.broadcast %371 : vector<1x512xf32> to vector<4x512xf32>
    %374 = arith.mulf %372, %373 : vector<4x512xf32>
    %375 = arith.addf %369, %374 : vector<4x512xf32>
    %c1_i32_19 = arith.constant 1 : i32
    %376 = tpu.dynamic_rotate %287 by %c1_i32_19 dim 1 : vector<4x512xf32>, i32 -> vector<4x512xf32>
    %377 = vector.extract_strided_slice %4 {offsets = [3, 0], sizes = [1, 512], strides = [1, 1]} : vector<9x512xf32> to vector<1x512xf32>
    %378 = vector.broadcast %377 : vector<1x512xf32> to vector<4x512xf32>
    %379 = arith.mulf %376, %378 : vector<4x512xf32>
    %380 = vector.extract_strided_slice %2 {offsets = [0, 12], sizes = [4, 4], strides = [1, 1]} : vector<4x36xf32> to vector<4x4xf32>
    %381 = vector.extract_strided_slice %380 {offsets = [0, 0], sizes = [4, 1], strides = [1, 1]} : vector<4x4xf32> to vector<4x1xf32>
    %382 = vector.extract_strided_slice %379 {offsets = [0, 0], sizes = [1, 512], strides = [1, 1]} : vector<4x512xf32> to vector<1x512xf32>
    %383 = vector.broadcast %381 : vector<4x1xf32> to vector<4x512xf32>
    %384 = vector.broadcast %382 : vector<1x512xf32> to vector<4x512xf32>
    %385 = arith.mulf %383, %384 : vector<4x512xf32>
    %386 = arith.addf %375, %385 : vector<4x512xf32>
    %387 = vector.extract_strided_slice %380 {offsets = [0, 1], sizes = [4, 1], strides = [1, 1]} : vector<4x4xf32> to vector<4x1xf32>
    %388 = vector.extract_strided_slice %379 {offsets = [1, 0], sizes = [1, 512], strides = [1, 1]} : vector<4x512xf32> to vector<1x512xf32>
    %389 = vector.broadcast %387 : vector<4x1xf32> to vector<4x512xf32>
    %390 = vector.broadcast %388 : vector<1x512xf32> to vector<4x512xf32>
    %391 = arith.mulf %389, %390 : vector<4x512xf32>
    %392 = arith.addf %386, %391 : vector<4x512xf32>
    %393 = vector.extract_strided_slice %380 {offsets = [0, 2], sizes = [4, 1], strides = [1, 1]} : vector<4x4xf32> to vector<4x1xf32>
    %394 = vector.extract_strided_slice %379 {offsets = [2, 0], sizes = [1, 512], strides = [1, 1]} : vector<4x512xf32> to vector<1x512xf32>
    %395 = vector.broadcast %393 : vector<4x1xf32> to vector<4x512xf32>
    %396 = vector.broadcast %394 : vector<1x512xf32> to vector<4x512xf32>
    %397 = arith.mulf %395, %396 : vector<4x512xf32>
    %398 = arith.addf %392, %397 : vector<4x512xf32>
    %399 = vector.extract_strided_slice %380 {offsets = [0, 3], sizes = [4, 1], strides = [1, 1]} : vector<4x4xf32> to vector<4x1xf32>
    %400 = vector.extract_strided_slice %379 {offsets = [3, 0], sizes = [1, 512], strides = [1, 1]} : vector<4x512xf32> to vector<1x512xf32>
    %401 = vector.broadcast %399 : vector<4x1xf32> to vector<4x512xf32>
    %402 = vector.broadcast %400 : vector<1x512xf32> to vector<4x512xf32>
    %403 = arith.mulf %401, %402 : vector<4x512xf32>
    %404 = arith.addf %398, %403 : vector<4x512xf32>
    %405 = vector.extract_strided_slice %2 {offsets = [0, 16], sizes = [4, 4], strides = [1, 1]} : vector<4x36xf32> to vector<4x4xf32>
    %406 = vector.extract_strided_slice %405 {offsets = [0, 0], sizes = [4, 1], strides = [1, 1]} : vector<4x4xf32> to vector<4x1xf32>
    %407 = vector.extract_strided_slice %287 {offsets = [0, 0], sizes = [1, 512], strides = [1, 1]} : vector<4x512xf32> to vector<1x512xf32>
    %408 = vector.broadcast %406 : vector<4x1xf32> to vector<4x512xf32>
    %409 = vector.broadcast %407 : vector<1x512xf32> to vector<4x512xf32>
    %410 = arith.mulf %408, %409 : vector<4x512xf32>
    %411 = arith.addf %404, %410 : vector<4x512xf32>
    %412 = vector.extract_strided_slice %405 {offsets = [0, 1], sizes = [4, 1], strides = [1, 1]} : vector<4x4xf32> to vector<4x1xf32>
    %413 = vector.extract_strided_slice %287 {offsets = [1, 0], sizes = [1, 512], strides = [1, 1]} : vector<4x512xf32> to vector<1x512xf32>
    %414 = vector.broadcast %412 : vector<4x1xf32> to vector<4x512xf32>
    %415 = vector.broadcast %413 : vector<1x512xf32> to vector<4x512xf32>
    %416 = arith.mulf %414, %415 : vector<4x512xf32>
    %417 = arith.addf %411, %416 : vector<4x512xf32>
    %418 = vector.extract_strided_slice %405 {offsets = [0, 2], sizes = [4, 1], strides = [1, 1]} : vector<4x4xf32> to vector<4x1xf32>
    %419 = vector.extract_strided_slice %287 {offsets = [2, 0], sizes = [1, 512], strides = [1, 1]} : vector<4x512xf32> to vector<1x512xf32>
    %420 = vector.broadcast %418 : vector<4x1xf32> to vector<4x512xf32>
    %421 = vector.broadcast %419 : vector<1x512xf32> to vector<4x512xf32>
    %422 = arith.mulf %420, %421 : vector<4x512xf32>
    %423 = arith.addf %417, %422 : vector<4x512xf32>
    %424 = vector.extract_strided_slice %405 {offsets = [0, 3], sizes = [4, 1], strides = [1, 1]} : vector<4x4xf32> to vector<4x1xf32>
    %425 = vector.extract_strided_slice %287 {offsets = [3, 0], sizes = [1, 512], strides = [1, 1]} : vector<4x512xf32> to vector<1x512xf32>
    %426 = vector.broadcast %424 : vector<4x1xf32> to vector<4x512xf32>
    %427 = vector.broadcast %425 : vector<1x512xf32> to vector<4x512xf32>
    %428 = arith.mulf %426, %427 : vector<4x512xf32>
    %429 = arith.addf %423, %428 : vector<4x512xf32>
    %c511_i32_20 = arith.constant 511 : i32
    %430 = tpu.dynamic_rotate %287 by %c511_i32_20 dim 1 : vector<4x512xf32>, i32 -> vector<4x512xf32>
    %431 = vector.extract_strided_slice %4 {offsets = [5, 0], sizes = [1, 512], strides = [1, 1]} : vector<9x512xf32> to vector<1x512xf32>
    %432 = vector.broadcast %431 : vector<1x512xf32> to vector<4x512xf32>
    %433 = arith.mulf %430, %432 : vector<4x512xf32>
    %434 = vector.extract_strided_slice %2 {offsets = [0, 20], sizes = [4, 4], strides = [1, 1]} : vector<4x36xf32> to vector<4x4xf32>
    %435 = vector.extract_strided_slice %434 {offsets = [0, 0], sizes = [4, 1], strides = [1, 1]} : vector<4x4xf32> to vector<4x1xf32>
    %436 = vector.extract_strided_slice %433 {offsets = [0, 0], sizes = [1, 512], strides = [1, 1]} : vector<4x512xf32> to vector<1x512xf32>
    %437 = vector.broadcast %435 : vector<4x1xf32> to vector<4x512xf32>
    %438 = vector.broadcast %436 : vector<1x512xf32> to vector<4x512xf32>
    %439 = arith.mulf %437, %438 : vector<4x512xf32>
    %440 = arith.addf %429, %439 : vector<4x512xf32>
    %441 = vector.extract_strided_slice %434 {offsets = [0, 1], sizes = [4, 1], strides = [1, 1]} : vector<4x4xf32> to vector<4x1xf32>
    %442 = vector.extract_strided_slice %433 {offsets = [1, 0], sizes = [1, 512], strides = [1, 1]} : vector<4x512xf32> to vector<1x512xf32>
    %443 = vector.broadcast %441 : vector<4x1xf32> to vector<4x512xf32>
    %444 = vector.broadcast %442 : vector<1x512xf32> to vector<4x512xf32>
    %445 = arith.mulf %443, %444 : vector<4x512xf32>
    %446 = arith.addf %440, %445 : vector<4x512xf32>
    %447 = vector.extract_strided_slice %434 {offsets = [0, 2], sizes = [4, 1], strides = [1, 1]} : vector<4x4xf32> to vector<4x1xf32>
    %448 = vector.extract_strided_slice %433 {offsets = [2, 0], sizes = [1, 512], strides = [1, 1]} : vector<4x512xf32> to vector<1x512xf32>
    %449 = vector.broadcast %447 : vector<4x1xf32> to vector<4x512xf32>
    %450 = vector.broadcast %448 : vector<1x512xf32> to vector<4x512xf32>
    %451 = arith.mulf %449, %450 : vector<4x512xf32>
    %452 = arith.addf %446, %451 : vector<4x512xf32>
    %453 = vector.extract_strided_slice %434 {offsets = [0, 3], sizes = [4, 1], strides = [1, 1]} : vector<4x4xf32> to vector<4x1xf32>
    %454 = vector.extract_strided_slice %433 {offsets = [3, 0], sizes = [1, 512], strides = [1, 1]} : vector<4x512xf32> to vector<1x512xf32>
    %455 = vector.broadcast %453 : vector<4x1xf32> to vector<4x512xf32>
    %456 = vector.broadcast %454 : vector<1x512xf32> to vector<4x512xf32>
    %457 = arith.mulf %455, %456 : vector<4x512xf32>
    %458 = arith.addf %452, %457 : vector<4x512xf32>
    %c497_i32_21 = arith.constant 497 : i32
    %459 = tpu.dynamic_rotate %287 by %c497_i32_21 dim 1 : vector<4x512xf32>, i32 -> vector<4x512xf32>
    %460 = vector.extract_strided_slice %4 {offsets = [6, 0], sizes = [1, 512], strides = [1, 1]} : vector<9x512xf32> to vector<1x512xf32>
    %461 = vector.broadcast %460 : vector<1x512xf32> to vector<4x512xf32>
    %462 = arith.mulf %459, %461 : vector<4x512xf32>
    %463 = vector.extract_strided_slice %2 {offsets = [0, 24], sizes = [4, 4], strides = [1, 1]} : vector<4x36xf32> to vector<4x4xf32>
    %464 = vector.extract_strided_slice %463 {offsets = [0, 0], sizes = [4, 1], strides = [1, 1]} : vector<4x4xf32> to vector<4x1xf32>
    %465 = vector.extract_strided_slice %462 {offsets = [0, 0], sizes = [1, 512], strides = [1, 1]} : vector<4x512xf32> to vector<1x512xf32>
    %466 = vector.broadcast %464 : vector<4x1xf32> to vector<4x512xf32>
    %467 = vector.broadcast %465 : vector<1x512xf32> to vector<4x512xf32>
    %468 = arith.mulf %466, %467 : vector<4x512xf32>
    %469 = arith.addf %458, %468 : vector<4x512xf32>
    %470 = vector.extract_strided_slice %463 {offsets = [0, 1], sizes = [4, 1], strides = [1, 1]} : vector<4x4xf32> to vector<4x1xf32>
    %471 = vector.extract_strided_slice %462 {offsets = [1, 0], sizes = [1, 512], strides = [1, 1]} : vector<4x512xf32> to vector<1x512xf32>
    %472 = vector.broadcast %470 : vector<4x1xf32> to vector<4x512xf32>
    %473 = vector.broadcast %471 : vector<1x512xf32> to vector<4x512xf32>
    %474 = arith.mulf %472, %473 : vector<4x512xf32>
    %475 = arith.addf %469, %474 : vector<4x512xf32>
    %476 = vector.extract_strided_slice %463 {offsets = [0, 2], sizes = [4, 1], strides = [1, 1]} : vector<4x4xf32> to vector<4x1xf32>
    %477 = vector.extract_strided_slice %462 {offsets = [2, 0], sizes = [1, 512], strides = [1, 1]} : vector<4x512xf32> to vector<1x512xf32>
    %478 = vector.broadcast %476 : vector<4x1xf32> to vector<4x512xf32>
    %479 = vector.broadcast %477 : vector<1x512xf32> to vector<4x512xf32>
    %480 = arith.mulf %478, %479 : vector<4x512xf32>
    %481 = arith.addf %475, %480 : vector<4x512xf32>
    %482 = vector.extract_strided_slice %463 {offsets = [0, 3], sizes = [4, 1], strides = [1, 1]} : vector<4x4xf32> to vector<4x1xf32>
    %483 = vector.extract_strided_slice %462 {offsets = [3, 0], sizes = [1, 512], strides = [1, 1]} : vector<4x512xf32> to vector<1x512xf32>
    %484 = vector.broadcast %482 : vector<4x1xf32> to vector<4x512xf32>
    %485 = vector.broadcast %483 : vector<1x512xf32> to vector<4x512xf32>
    %486 = arith.mulf %484, %485 : vector<4x512xf32>
    %487 = arith.addf %481, %486 : vector<4x512xf32>
    %c496_i32_22 = arith.constant 496 : i32
    %488 = tpu.dynamic_rotate %287 by %c496_i32_22 dim 1 : vector<4x512xf32>, i32 -> vector<4x512xf32>
    %489 = vector.extract_strided_slice %4 {offsets = [7, 0], sizes = [1, 512], strides = [1, 1]} : vector<9x512xf32> to vector<1x512xf32>
    %490 = vector.broadcast %489 : vector<1x512xf32> to vector<4x512xf32>
    %491 = arith.mulf %488, %490 : vector<4x512xf32>
    %492 = vector.extract_strided_slice %2 {offsets = [0, 28], sizes = [4, 4], strides = [1, 1]} : vector<4x36xf32> to vector<4x4xf32>
    %493 = vector.extract_strided_slice %492 {offsets = [0, 0], sizes = [4, 1], strides = [1, 1]} : vector<4x4xf32> to vector<4x1xf32>
    %494 = vector.extract_strided_slice %491 {offsets = [0, 0], sizes = [1, 512], strides = [1, 1]} : vector<4x512xf32> to vector<1x512xf32>
    %495 = vector.broadcast %493 : vector<4x1xf32> to vector<4x512xf32>
    %496 = vector.broadcast %494 : vector<1x512xf32> to vector<4x512xf32>
    %497 = arith.mulf %495, %496 : vector<4x512xf32>
    %498 = arith.addf %487, %497 : vector<4x512xf32>
    %499 = vector.extract_strided_slice %492 {offsets = [0, 1], sizes = [4, 1], strides = [1, 1]} : vector<4x4xf32> to vector<4x1xf32>
    %500 = vector.extract_strided_slice %491 {offsets = [1, 0], sizes = [1, 512], strides = [1, 1]} : vector<4x512xf32> to vector<1x512xf32>
    %501 = vector.broadcast %499 : vector<4x1xf32> to vector<4x512xf32>
    %502 = vector.broadcast %500 : vector<1x512xf32> to vector<4x512xf32>
    %503 = arith.mulf %501, %502 : vector<4x512xf32>
    %504 = arith.addf %498, %503 : vector<4x512xf32>
    %505 = vector.extract_strided_slice %492 {offsets = [0, 2], sizes = [4, 1], strides = [1, 1]} : vector<4x4xf32> to vector<4x1xf32>
    %506 = vector.extract_strided_slice %491 {offsets = [2, 0], sizes = [1, 512], strides = [1, 1]} : vector<4x512xf32> to vector<1x512xf32>
    %507 = vector.broadcast %505 : vector<4x1xf32> to vector<4x512xf32>
    %508 = vector.broadcast %506 : vector<1x512xf32> to vector<4x512xf32>
    %509 = arith.mulf %507, %508 : vector<4x512xf32>
    %510 = arith.addf %504, %509 : vector<4x512xf32>
    %511 = vector.extract_strided_slice %492 {offsets = [0, 3], sizes = [4, 1], strides = [1, 1]} : vector<4x4xf32> to vector<4x1xf32>
    %512 = vector.extract_strided_slice %491 {offsets = [3, 0], sizes = [1, 512], strides = [1, 1]} : vector<4x512xf32> to vector<1x512xf32>
    %513 = vector.broadcast %511 : vector<4x1xf32> to vector<4x512xf32>
    %514 = vector.broadcast %512 : vector<1x512xf32> to vector<4x512xf32>
    %515 = arith.mulf %513, %514 : vector<4x512xf32>
    %516 = arith.addf %510, %515 : vector<4x512xf32>
    %c495_i32_23 = arith.constant 495 : i32
    %517 = tpu.dynamic_rotate %287 by %c495_i32_23 dim 1 : vector<4x512xf32>, i32 -> vector<4x512xf32>
    %518 = vector.extract_strided_slice %4 {offsets = [8, 0], sizes = [1, 512], strides = [1, 1]} : vector<9x512xf32> to vector<1x512xf32>
    %519 = vector.broadcast %518 : vector<1x512xf32> to vector<4x512xf32>
    %520 = arith.mulf %517, %519 : vector<4x512xf32>
    %521 = vector.extract_strided_slice %2 {offsets = [0, 32], sizes = [4, 4], strides = [1, 1]} : vector<4x36xf32> to vector<4x4xf32>
    %522 = vector.extract_strided_slice %521 {offsets = [0, 0], sizes = [4, 1], strides = [1, 1]} : vector<4x4xf32> to vector<4x1xf32>
    %523 = vector.extract_strided_slice %520 {offsets = [0, 0], sizes = [1, 512], strides = [1, 1]} : vector<4x512xf32> to vector<1x512xf32>
    %524 = vector.broadcast %522 : vector<4x1xf32> to vector<4x512xf32>
    %525 = vector.broadcast %523 : vector<1x512xf32> to vector<4x512xf32>
    %526 = arith.mulf %524, %525 : vector<4x512xf32>
    %527 = arith.addf %516, %526 : vector<4x512xf32>
    %528 = vector.extract_strided_slice %521 {offsets = [0, 1], sizes = [4, 1], strides = [1, 1]} : vector<4x4xf32> to vector<4x1xf32>
    %529 = vector.extract_strided_slice %520 {offsets = [1, 0], sizes = [1, 512], strides = [1, 1]} : vector<4x512xf32> to vector<1x512xf32>
    %530 = vector.broadcast %528 : vector<4x1xf32> to vector<4x512xf32>
    %531 = vector.broadcast %529 : vector<1x512xf32> to vector<4x512xf32>
    %532 = arith.mulf %530, %531 : vector<4x512xf32>
    %533 = arith.addf %527, %532 : vector<4x512xf32>
    %534 = vector.extract_strided_slice %521 {offsets = [0, 2], sizes = [4, 1], strides = [1, 1]} : vector<4x4xf32> to vector<4x1xf32>
    %535 = vector.extract_strided_slice %520 {offsets = [2, 0], sizes = [1, 512], strides = [1, 1]} : vector<4x512xf32> to vector<1x512xf32>
    %536 = vector.broadcast %534 : vector<4x1xf32> to vector<4x512xf32>
    %537 = vector.broadcast %535 : vector<1x512xf32> to vector<4x512xf32>
    %538 = arith.mulf %536, %537 : vector<4x512xf32>
    %539 = arith.addf %533, %538 : vector<4x512xf32>
    %540 = vector.extract_strided_slice %521 {offsets = [0, 3], sizes = [4, 1], strides = [1, 1]} : vector<4x4xf32> to vector<4x1xf32>
    %541 = vector.extract_strided_slice %520 {offsets = [3, 0], sizes = [1, 512], strides = [1, 1]} : vector<4x512xf32> to vector<1x512xf32>
    %542 = vector.broadcast %540 : vector<4x1xf32> to vector<4x512xf32>
    %543 = vector.broadcast %541 : vector<1x512xf32> to vector<4x512xf32>
    %544 = arith.mulf %542, %543 : vector<4x512xf32>
    %545 = arith.addf %539, %544 : vector<4x512xf32>
    %546 = vector.extract_strided_slice %3 {offsets = [0, 2], sizes = [4, 1], strides = [1, 1]} : vector<4x4xf32> to vector<4x1xf32>
    %547 = vector.extract_strided_slice %3 {offsets = [0, 3], sizes = [4, 1], strides = [1, 1]} : vector<4x4xf32> to vector<4x1xf32>
    %cst_24 = arith.constant dense<0.000000e+00> : vector<4xf32>
    %548 = vector.multi_reduction <add>, %545, %cst_24 [1] : vector<4x512xf32> to vector<4xf32>
    %549 = vector.shape_cast %548 : vector<4xf32> to vector<4x1xf32>
    %cst_25 = arith.constant 0.001953125 : f32
    %550 = vector.broadcast %cst_25 : f32 to vector<4x1xf32>
    %551 = arith.mulf %549, %550 : vector<4x1xf32>
    %552 = arith.mulf %545, %545 : vector<4x512xf32>
    %cst_26 = arith.constant dense<0.000000e+00> : vector<4xf32>
    %553 = vector.multi_reduction <add>, %552, %cst_26 [1] : vector<4x512xf32> to vector<4xf32>
    %554 = vector.shape_cast %553 : vector<4xf32> to vector<4x1xf32>
    %cst_27 = arith.constant 0.001953125 : f32
    %555 = vector.broadcast %cst_27 : f32 to vector<4x1xf32>
    %556 = arith.mulf %554, %555 : vector<4x1xf32>
    %557 = arith.mulf %551, %551 : vector<4x1xf32>
    %558 = arith.subf %556, %557 : vector<4x1xf32>
    %cst_28 = arith.constant 9.99999974E-6 : f32
    %559 = vector.broadcast %cst_28 : f32 to vector<4x1xf32>
    %560 = arith.addf %558, %559 : vector<4x1xf32>
    %561 = math.rsqrt %560 : vector<4x1xf32>
    %562 = arith.mulf %546, %561 : vector<4x1xf32>
    %563 = vector.broadcast %562 : vector<4x1xf32> to vector<4x512xf32>
    %564 = arith.mulf %545, %563 : vector<4x512xf32>
    %565 = arith.mulf %551, %562 : vector<4x1xf32>
    %566 = arith.subf %547, %565 : vector<4x1xf32>
    %567 = vector.broadcast %566 : vector<4x1xf32> to vector<4x512xf32>
    %568 = arith.addf %564, %567 : vector<4x512xf32>
    %569 = arith.addf %568, %0 : vector<4x512xf32>
    %cst_29 = arith.constant 0.000000e+00 : f32
    %570 = vector.broadcast %cst_29 : f32 to vector<4x512xf32>
    %571 = arith.maximumf %569, %570 : vector<4x512xf32>
    %c0_30 = arith.constant 0 : index
    %c0_31 = arith.constant 0 : index
    %572 = vector.load %arg5[%c0_30, %c0_31] : memref<4x512xf32, #tpu.memory_space<vmem>>, vector<4x512xf32>
    tpu.vector_store %arg5[%c0_30, %c0_31], %571 {strides = array<i32>} : memref<4x512xf32, #tpu.memory_space<vmem>>, vector<4x512xf32>,
    return
  }
}

</mosaic_0001>

<llo_original>
// kernel: tpu_custom_call.1
$region0: #{tpu_custom_call.1}
  #allocation0 [shape = 'u32[]', space=smem, size = 0x4, offset = 0x4, fixed_abs, tag = 'smem constant byte address 0x4 - core index']
  #allocation1 [shape = 'u32[72,128]{1,0:T(1,128)}', space=vmem, size = 0x9000, scoped, tag = 'internal scratch']
  %s0 = inlined_call_operand.hbm [shape: f32[4,512], index: 0, kind: input, shape index: {}]
  %s1 = inlined_call_operand.hbm [shape: f32[4,36], index: 1, kind: input, shape index: {}]
  %s2 = inlined_call_operand.hbm [shape: f32[4,36], index: 2, kind: input, shape index: {}]
  %s3 = inlined_call_operand.hbm [shape: f32[4,4], index: 3, kind: input, shape index: {}]
  %s4 = inlined_call_operand.hbm [shape: f32[9,512], index: 4, kind: input, shape index: {}]
  %s5 = inlined_call_operand.hbm [shape: f32[4,512], index: 5, kind: output, shape index: {}]
  %s6 = sld [smem:[#allocation0]]
  $region50: #{tpu_custom_call.1} parent=0
    _
  %s8 = ssub.s32 1, %s6
  %s9 = scalar_select 0, %s8, %s6
  $region1: #{tpu_custom_call.1} parent=0
    #allocation2 [shape = 'u8[8192]{0}', space=vmem, size = 0x2000, scoped, tag = 'input window, operand 0, single buffered']
    #allocation3 [shape = 's32[1]{0}', space=sflag, size = 0x4, scoped, tag = 'scoped memory for tpu_custom_call.1']
    #allocation4 [shape = 's32[1]{0}', space=sflag, size = 0x4, scoped, tag = 'scoped memory for tpu_custom_call.1']
    #allocation5 [shape = 'u8[2048]{0}', space=vmem, size = 0x800, scoped, tag = 'input window, operand 1, single buffered']
    #allocation6 [shape = 's32[1]{0}', space=sflag, size = 0x4, scoped, tag = 'scoped memory for tpu_custom_call.1']
    #allocation7 [shape = 'u8[2048]{0}', space=vmem, size = 0x800, scoped, tag = 'input window, operand 2, single buffered']
    #allocation8 [shape = 'u8[2048]{0}', space=vmem, size = 0x800, scoped, tag = 'input window, operand 3, single buffered']
    #allocation9 [shape = 's32[1]{0}', space=sflag, size = 0x4, scoped, tag = 'scoped memory for tpu_custom_call.1']
    #allocation10 [shape = 'u8[32768]{0}', space=vmem, size = 0x8000, scoped, tag = 'input window, operand 4, single buffered']
    #allocation11 [shape = 'u8[8192]{0}', space=vmem, size = 0x2000, scoped, tag = 'output window, operand 0, single buffered']
    %10 = vsyncpa [#allocation3], 0
    %11 = vsyncpa [#allocation6], 0
    %12 = vsyncpa [#allocation9], 0
    %13 = vsyncpa [#allocation4], 0
    // Predicated region
    $region2: #{tpu_custom_call.1} parent=1 // pred_check
      _
    $region3: #{tpu_custom_call.1} parent=1 // pred_check_branch
      %15 = sbr.rel (0) target = $region5
    $region4: #{tpu_custom_call.1} parent=1 // pred_region
      %17 = vsyncadd [#allocation3], 0
      %s19 = sshll.u32 %s0, 4
      %s20 = int_to_ptr.hbm [resolvable:$true] %s19
      %s21 = sshll.u32 [#allocation2], 4
      %s22 = int_to_ptr.vmem [resolvable:$true] %s21
      %24 = dma.hbm_to_vmem [thread:$0]  %s20, 256, %s22, [#allocation3]
    $region5: #{tpu_custom_call.1} parent=1 // pred_fallthru
      _
    // Predicated region
    $region6: #{tpu_custom_call.1} parent=1 // pred_check
      _
    $region7: #{tpu_custom_call.1} parent=1 // pred_check_branch
      %26 = sbr.rel (0) target = $region9
    $region8: #{tpu_custom_call.1} parent=1 // pred_region
      %28 = vsyncadd [#allocation6], 0
      %s30 = sshll.u32 %s1, 4
      %s31 = int_to_ptr.hbm [resolvable:$true] %s30
      %s32 = sshll.u32 [#allocation5], 4
      %s33 = int_to_ptr.vmem [resolvable:$true] %s32
      %35 = dma.hbm_to_vmem [thread:$0]  %s31, 64, %s33, [#allocation6]
    $region9: #{tpu_custom_call.1} parent=1 // pred_fallthru
      _
    // Predicated region
    $region10: #{tpu_custom_call.1} parent=1 // pred_check
      _
    $region11: #{tpu_custom_call.1} parent=1 // pred_check_branch
      %37 = sbr.rel (0) target = $region13
    $region12: #{tpu_custom_call.1} parent=1 // pred_region
      %39 = vsyncadd [#allocation6], 0
      %s41 = sshll.u32 %s2, 4
      %s42 = int_to_ptr.hbm [resolvable:$true] %s41
      %s43 = sshll.u32 [#allocation7], 4
      %s44 = int_to_ptr.vmem [resolvable:$true] %s43
      %46 = dma.hbm_to_vmem [thread:$0]  %s42, 64, %s44, [#allocation6]
    $region13: #{tpu_custom_call.1} parent=1 // pred_fallthru
      _
    // Predicated region
    $region14: #{tpu_custom_call.1} parent=1 // pred_check
      _
    $region15: #{tpu_custom_call.1} parent=1 // pred_check_branch
      %48 = sbr.rel (0) target = $region17
    $region16: #{tpu_custom_call.1} parent=1 // pred_region
      %50 = vsyncadd [#allocation9], 0
      %s52 = sshll.u32 %s3, 4
      %s53 = int_to_ptr.hbm [resolvable:$true] %s52
      %s54 = sshll.u32 [#allocation8], 4
      %s55 = int_to_ptr.vmem [resolvable:$true] %s54
      %57 = dma.hbm_to_vmem [thread:$0]  %s53, 64, %s55, [#allocation9]
    $region17: #{tpu_custom_call.1} parent=1 // pred_fallthru
      _
    // Predicated region
    $region18: #{tpu_custom_call.1} parent=1 // pred_check
      _
    $region19: #{tpu_custom_call.1} parent=1 // pred_check_branch
      %59 = sbr.rel (0) target = $region21
    $region20: #{tpu_custom_call.1} parent=1 // pred_region
      %61 = vsyncadd [#allocation9], 0
      %s62 = sshll.u32 %s4, 4
      %s63 = int_to_ptr.hbm [resolvable:$true] %s62
      %s64 = sshll.u32 [#allocation10], 4
      %s65 = int_to_ptr.vmem [resolvable:$true] %s64
      %70 = dma.hbm_to_vmem [thread:$0]  %s63, 1024, %s65, [#allocation9], 512, 512, 32
    $region21: #{tpu_custom_call.1} parent=1 // pred_fallthru
      _
    // Predicated region
    $region22: #{tpu_custom_call.1} parent=1 // pred_check
      _
    $region23: #{tpu_custom_call.1} parent=1 // pred_check_branch
      %72 = sbr.rel (0) target = $region25
    $region24: #{tpu_custom_call.1} parent=1 // pred_region
      %74 = dma.done [#allocation3], 256
    $region25: #{tpu_custom_call.1} parent=1 // pred_fallthru
      _
    // Predicated region
    $region26: #{tpu_custom_call.1} parent=1 // pred_check
      _
    $region27: #{tpu_custom_call.1} parent=1 // pred_check_branch
      %76 = sbr.rel (0) target = $region29
    $region28: #{tpu_custom_call.1} parent=1 // pred_region
      %78 = dma.done [#allocation6], 64
    $region29: #{tpu_custom_call.1} parent=1 // pred_fallthru
      _
    // Predicated region
    $region30: #{tpu_custom_call.1} parent=1 // pred_check
      _
    $region31: #{tpu_custom_call.1} parent=1 // pred_check_branch
      %80 = sbr.rel (0) target = $region33
    $region32: #{tpu_custom_call.1} parent=1 // pred_region
      %82 = dma.done [#allocation6], 64
    $region33: #{tpu_custom_call.1} parent=1 // pred_fallthru
      _
    // Predicated region
    $region34: #{tpu_custom_call.1} parent=1 // pred_check
      _
    $region35: #{tpu_custom_call.1} parent=1 // pred_check_branch
      %84 = sbr.rel (0) target = $region37
    $region36: #{tpu_custom_call.1} parent=1 // pred_region
      %86 = dma.done [#allocation9], 64
    $region37: #{tpu_custom_call.1} parent=1 // pred_fallthru
      _
    // Predicated region
    $region38: #{tpu_custom_call.1} parent=1 // pred_check
      _
    $region39: #{tpu_custom_call.1} parent=1 // pred_check_branch
      %88 = sbr.rel (0) target = $region41
    $region40: #{tpu_custom_call.1} parent=1 // pred_region
      %90 = dma.done [#allocation9], 1024
    $region41: #{tpu_custom_call.1} parent=1 // pred_fallthru
      _
    %v91 = vld [vmem:[#allocation2] sm:$0xff]
    %v92 = vld [vmem:[#allocation2 + $0x8] sm:$0xff]
    %v93 = vld [vmem:[#allocation5] sm:$0xf]
    %v94 = vld [vmem:[#allocation7] sm:$0xf]
    %v95 = vld [vmem:[#allocation8] sm:$0xf]
    %v96 = vld [vmem:[#allocation10] sm:$0xff]
    %v97 = vld [vmem:[#allocation10 + $0x8] sm:$0xff]
    %v98 = vld [vmem:[#allocation10 + $0x10] sm:$0xff]
    %v99 = vld [vmem:[#allocation10 + $0x18] sm:$0xff]
    %v100 = vld [vmem:[#allocation10 + $0x20] sm:$0x1]
    %v101 = vld [vmem:[#allocation10 + $0x28] sm:$0x1]
    %v102 = vld [vmem:[#allocation10 + $0x30] sm:$0x1]
    %v103 = vld [vmem:[#allocation10 + $0x38] sm:$0x1]
    %106 = vst [vmem:[#allocation1] ss:$2 sm:$0xff] %v91
    %s107 = scalar_lea.vmem [#allocation1], 16
    %108 = vst [vmem:[%s107] ss:$2 sm:$0xff] %v92
    %v109 = vld.sshfl [vmem:[#allocation1] sm:$0xff pattern:$0x75316420]
    %v110 = vld.sshfl [vmem:[#allocation1 + $0x8] sm:$0xff pattern:$0x75316420]
    %v111 = vld.sshfl [vmem:[#allocation1 + $0x10] sm:$0xff pattern:$0x75316420]
    %v112 = vld.sshfl [vmem:[#allocation1 + $0x18] sm:$0xff pattern:$0x75316420]
    %117 = vrot.lane.b32.xlu0 %v109, 17
    %v118 = vpop.permute.xlu0 %117
    %119 = vrot.lane.b32.xlu0 %v110, 17
    %v120 = vpop.permute.xlu0 %119
    %121 = vrot.lane.b32.xlu0 %v111, 17
    %v122 = vpop.permute.xlu0 %121
    %123 = vrot.lane.b32.xlu0 %v112, 17
    %v124 = vpop.permute.xlu0 %123
    %v125 = vlaneseq
    %v126 = vand.u32 %v125, 127
    %vm127 = vcmp.lt.s32.totalorder %v126, 17
    %v128 = vsel %vm127, %v122, %v124
    %v129 = vsel %vm127, %v120, %v122
    %v130 = vsel %vm127, %v118, %v120
    %v131 = vsel %vm127, %v124, %v118
    %v132 = vperm.slane %v96, 0
    %v133 = vperm.slane %v97, 0
    %v134 = vperm.slane %v98, 0
    %v135 = vperm.slane %v99, 0
    %v136 = vmul.f32 %v131, %v132
    %v137 = vmul.f32 %v130, %v133
    %v138 = vmul.f32 %v129, %v134
    %v139 = vmul.f32 %v128, %v135
    %141 = vset.pattern.permute.xlu0 0
    %142 = vperm.xlu0 %141, %v93
    %v143 = vpop.permute.xlu0 %142
    %v145 = vperm.slane %v136, 0
    %v146 = vperm.slane %v137, 0
    %v147 = vperm.slane %v138, 0
    %v148 = vperm.slane %v139, 0
    %v149 = vmul.f32 %v143, %v145
    %v150 = vmul.f32 %v143, %v146
    %v151 = vmul.f32 %v143, %v147
    %v152 = vmul.f32 %v143, %v148
    %v153 = vadd.f32 %v149, 0.0
    %v154 = vadd.f32 %v150, 0.0
    %v155 = vadd.f32 %v151, 0.0
    %v156 = vadd.f32 %v152, 0.0
    %157 = vset.pattern.permute.xlu0 1
    %158 = vperm.xlu0 %157, %v93
    %v159 = vpop.permute.xlu0 %158
    %v161 = vperm.slane %v136, 1
    %v162 = vperm.slane %v137, 1
    %v163 = vperm.slane %v138, 1
    %v164 = vperm.slane %v139, 1
    %v165 = vmul.f32 %v159, %v161
    %v166 = vmul.f32 %v159, %v162
    %v167 = vmul.f32 %v159, %v163
    %v168 = vmul.f32 %v159, %v164
    %v169 = vadd.f32 %v153, %v165
    %v170 = vadd.f32 %v154, %v166
    %v171 = vadd.f32 %v155, %v167
    %v172 = vadd.f32 %v156, %v168
    %173 = vset.pattern.permute.xlu0 2
    %174 = vperm.xlu0 %173, %v93
    %v175 = vpop.permute.xlu0 %174
    %v177 = vperm.slane %v136, 2
    %v178 = vperm.slane %v137, 2
    %v179 = vperm.slane %v138, 2
    %v180 = vperm.slane %v139, 2
    %v181 = vmul.f32 %v175, %v177
    %v182 = vmul.f32 %v175, %v178
    %v183 = vmul.f32 %v175, %v179
    %v184 = vmul.f32 %v175, %v180
    %v185 = vadd.f32 %v169, %v181
    %v186 = vadd.f32 %v170, %v182
    %v187 = vadd.f32 %v171, %v183
    %v188 = vadd.f32 %v172, %v184
    %189 = vset.pattern.permute.xlu0 3
    %190 = vperm.xlu0 %189, %v93
    %v191 = vpop.permute.xlu0 %190
    %v193 = vperm.slane %v136, 3
    %v194 = vperm.slane %v137, 3
    %v195 = vperm.slane %v138, 3
    %v196 = vperm.slane %v139, 3
    %v197 = vmul.f32 %v191, %v193
    %v198 = vmul.f32 %v191, %v194
    %v199 = vmul.f32 %v191, %v195
    %v200 = vmul.f32 %v191, %v196
    %v201 = vadd.f32 %v185, %v197
    %v202 = vadd.f32 %v186, %v198
    %v203 = vadd.f32 %v187, %v199
    %v204 = vadd.f32 %v188, %v200
    %205 = vst [vmem:[#allocation1] ss:$2 sm:$0xff] %v91
    %s206 = scalar_lea.vmem [#allocation1], 16
    %207 = vst [vmem:[%s206] ss:$2 sm:$0xff] %v92
    %v208 = vld.sshfl [vmem:[#allocation1] sm:$0xff pattern:$0x75316420]
    %v209 = vld.sshfl [vmem:[#allocation1 + $0x8] sm:$0xff pattern:$0x75316420]
    %v210 = vld.sshfl [vmem:[#allocation1 + $0x10] sm:$0xff pattern:$0x75316420]
    %v211 = vld.sshfl [vmem:[#allocation1 + $0x18] sm:$0xff pattern:$0x75316420]
    %216 = vrot.lane.b32.xlu0 %v208, 16
    %v217 = vpop.permute.xlu0 %216
    %218 = vrot.lane.b32.xlu0 %v209, 16
    %v219 = vpop.permute.xlu0 %218
    %220 = vrot.lane.b32.xlu0 %v210, 16
    %v221 = vpop.permute.xlu0 %220
    %222 = vrot.lane.b32.xlu0 %v211, 16
    %v223 = vpop.permute.xlu0 %222
    %vm224 = vcmp.lt.s32.totalorder %v126, 16
    %v225 = vsel %vm224, %v221, %v223
    %v226 = vsel %vm224, %v219, %v221
    %v227 = vsel %vm224, %v217, %v219
    %v228 = vsel %vm224, %v223, %v217
    %v229 = vperm.slane %v96, 1
    %v230 = vperm.slane %v97, 1
    %v231 = vperm.slane %v98, 1
    %v232 = vperm.slane %v99, 1
    %v233 = vmul.f32 %v228, %v229
    %v234 = vmul.f32 %v227, %v230
    %v235 = vmul.f32 %v226, %v231
    %v236 = vmul.f32 %v225, %v232
    %237 = vset.pattern.permute.xlu0 4
    %238 = vperm.xlu0 %237, %v93
    %v239 = vpop.permute.xlu0 %238
    %v241 = vperm.slane %v233, 0
    %v242 = vperm.slane %v234, 0
    %v243 = vperm.slane %v235, 0
    %v244 = vperm.slane %v236, 0
    %v245 = vmul.f32 %v239, %v241
    %v246 = vmul.f32 %v239, %v242
    %v247 = vmul.f32 %v239, %v243
    %v248 = vmul.f32 %v239, %v244
    %v249 = vadd.f32 %v201, %v245
    %v250 = vadd.f32 %v202, %v246
    %v251 = vadd.f32 %v203, %v247
    %v252 = vadd.f32 %v204, %v248
    %253 = vset.pattern.permute.xlu0 5
    %254 = vperm.xlu0 %253, %v93
    %v255 = vpop.permute.xlu0 %254
    %v257 = vperm.slane %v233, 1
    %v258 = vperm.slane %v234, 1
    %v259 = vperm.slane %v235, 1
    %v260 = vperm.slane %v236, 1
    %v261 = vmul.f32 %v255, %v257
    %v262 = vmul.f32 %v255, %v258
    %v263 = vmul.f32 %v255, %v259
    %v264 = vmul.f32 %v255, %v260
    %v265 = vadd.f32 %v249, %v261
    %v266 = vadd.f32 %v250, %v262
    %v267 = vadd.f32 %v251, %v263
    %v268 = vadd.f32 %v252, %v264
    %269 = vset.pattern.permute.xlu0 6
    %270 = vperm.xlu0 %269, %v93
    %v271 = vpop.permute.xlu0 %270
    %v273 = vperm.slane %v233, 2
    %v274 = vperm.slane %v234, 2
    %v275 = vperm.slane %v235, 2
    %v276 = vperm.slane %v236, 2
    %v277 = vmul.f32 %v271, %v273
    %v278 = vmul.f32 %v271, %v274
    %v279 = vmul.f32 %v271, %v275
    %v280 = vmul.f32 %v271, %v276
    %v281 = vadd.f32 %v265, %v277
    %v282 = vadd.f32 %v266, %v278
    %v283 = vadd.f32 %v267, %v279
    %v284 = vadd.f32 %v268, %v280
    %285 = vset.pattern.permute.xlu0 7
    %286 = vperm.xlu0 %285, %v93
    %v287 = vpop.permute.xlu0 %286
    %v289 = vperm.slane %v233, 3
    %v290 = vperm.slane %v234, 3
    %v291 = vperm.slane %v235, 3
    %v292 = vperm.slane %v236, 3
    %v293 = vmul.f32 %v287, %v289
    %v294 = vmul.f32 %v287, %v290
    %v295 = vmul.f32 %v287, %v291
    %v296 = vmul.f32 %v287, %v292
    %v297 = vadd.f32 %v281, %v293
    %v298 = vadd.f32 %v282, %v294
    %v299 = vadd.f32 %v283, %v295
    %v300 = vadd.f32 %v284, %v296
    %301 = vst [vmem:[#allocation1] ss:$2 sm:$0xff] %v91
    %s302 = scalar_lea.vmem [#allocation1], 16
    %303 = vst [vmem:[%s302] ss:$2 sm:$0xff] %v92
    %v304 = vld.sshfl [vmem:[#allocation1] sm:$0xff pattern:$0x75316420]
    %v305 = vld.sshfl [vmem:[#allocation1 + $0x8] sm:$0xff pattern:$0x75316420]
    %v306 = vld.sshfl [vmem:[#allocation1 + $0x10] sm:$0xff pattern:$0x75316420]
    %v307 = vld.sshfl [vmem:[#allocation1 + $0x18] sm:$0xff pattern:$0x75316420]
    %312 = vrot.lane.b32.xlu0 %v304, 15
    %v313 = vpop.permute.xlu0 %312
    %314 = vrot.lane.b32.xlu0 %v305, 15
    %v315 = vpop.permute.xlu0 %314
    %316 = vrot.lane.b32.xlu0 %v306, 15
    %v317 = vpop.permute.xlu0 %316
    %318 = vrot.lane.b32.xlu0 %v307, 15
    %v319 = vpop.permute.xlu0 %318
    %vm320 = vcmp.lt.s32.totalorder %v126, 15
    %v321 = vsel %vm320, %v317, %v319
    %v322 = vsel %vm320, %v315, %v317
    %v323 = vsel %vm320, %v313, %v315
    %v324 = vsel %vm320, %v319, %v313
    %v325 = vperm.slane %v96, 2
    %v326 = vperm.slane %v97, 2
    %v327 = vperm.slane %v98, 2
    %v328 = vperm.slane %v99, 2
    %v329 = vmul.f32 %v324, %v325
    %v330 = vmul.f32 %v323, %v326
    %v331 = vmul.f32 %v322, %v327
    %v332 = vmul.f32 %v321, %v328
    %333 = vset.pattern.permute.xlu0 8
    %334 = vperm.xlu0 %333, %v93
    %v335 = vpop.permute.xlu0 %334
    %v337 = vperm.slane %v329, 0
    %v338 = vperm.slane %v330, 0
    %v339 = vperm.slane %v331, 0
    %v340 = vperm.slane %v332, 0
    %v341 = vmul.f32 %v335, %v337
    %v342 = vmul.f32 %v335, %v338
    %v343 = vmul.f32 %v335, %v339
    %v344 = vmul.f32 %v335, %v340
    %v345 = vadd.f32 %v297, %v341
    %v346 = vadd.f32 %v298, %v342
    %v347 = vadd.f32 %v299, %v343
    %v348 = vadd.f32 %v300, %v344
    %349 = vset.pattern.permute.xlu0 9
    %350 = vperm.xlu0 %349, %v93
    %v351 = vpop.permute.xlu0 %350
    %v353 = vperm.slane %v329, 1
    %v354 = vperm.slane %v330, 1
    %v355 = vperm.slane %v331, 1
    %v356 = vperm.slane %v332, 1
    %v357 = vmul.f32 %v351, %v353
    %v358 = vmul.f32 %v351, %v354
    %v359 = vmul.f32 %v351, %v355
    %v360 = vmul.f32 %v351, %v356
    %v361 = vadd.f32 %v345, %v357
    %v362 = vadd.f32 %v346, %v358
    %v363 = vadd.f32 %v347, %v359
    %v364 = vadd.f32 %v348, %v360
    %365 = vset.pattern.permute.xlu0 10
    %366 = vperm.xlu0 %365, %v93
    %v367 = vpop.permute.xlu0 %366
    %v369 = vperm.slane %v329, 2
    %v370 = vperm.slane %v330, 2
    %v371 = vperm.slane %v331, 2
    %v372 = vperm.slane %v332, 2
    %v373 = vmul.f32 %v367, %v369
    %v374 = vmul.f32 %v367, %v370
    %v375 = vmul.f32 %v367, %v371
    %v376 = vmul.f32 %v367, %v372
    %v377 = vadd.f32 %v361, %v373
    %v378 = vadd.f32 %v362, %v374
    %v379 = vadd.f32 %v363, %v375
    %v380 = vadd.f32 %v364, %v376
    %381 = vset.pattern.permute.xlu0 11
    %382 = vperm.xlu0 %381, %v93
    %v383 = vpop.permute.xlu0 %382
    %v385 = vperm.slane %v329, 3
    %v386 = vperm.slane %v330, 3
    %v387 = vperm.slane %v331, 3
    %v388 = vperm.slane %v332, 3
    %v389 = vmul.f32 %v383, %v385
    %v390 = vmul.f32 %v383, %v386
    %v391 = vmul.f32 %v383, %v387
    %v392 = vmul.f32 %v383, %v388
    %v393 = vadd.f32 %v377, %v389
    %v394 = vadd.f32 %v378, %v390
    %v395 = vadd.f32 %v379, %v391
    %v396 = vadd.f32 %v380, %v392
    %397 = vst [vmem:[#allocation1] ss:$2 sm:$0xff] %v91
    %s398 = scalar_lea.vmem [#allocation1], 16
    %399 = vst [vmem:[%s398] ss:$2 sm:$0xff] %v92
    %v400 = vld.sshfl [vmem:[#allocation1] sm:$0xff pattern:$0x75316420]
    %v401 = vld.sshfl [vmem:[#allocation1 + $0x8] sm:$0xff pattern:$0x75316420]
    %v402 = vld.sshfl [vmem:[#allocation1 + $0x10] sm:$0xff pattern:$0x75316420]
    %v403 = vld.sshfl [vmem:[#allocation1 + $0x18] sm:$0xff pattern:$0x75316420]
    %408 = vrot.lane.b32.xlu0 %v400, 1
    %v409 = vpop.permute.xlu0 %408
    %410 = vrot.lane.b32.xlu0 %v401, 1
    %v411 = vpop.permute.xlu0 %410
    %412 = vrot.lane.b32.xlu0 %v402, 1
    %v413 = vpop.permute.xlu0 %412
    %414 = vrot.lane.b32.xlu0 %v403, 1
    %v415 = vpop.permute.xlu0 %414
    %vm416 = vcmp.lt.s32.totalorder %v126, 1
    %v417 = vsel %vm416, %v413, %v415
    %v418 = vsel %vm416, %v411, %v413
    %v419 = vsel %vm416, %v409, %v411
    %v420 = vsel %vm416, %v415, %v409
    %v421 = vperm.slane %v96, 3
    %v422 = vperm.slane %v97, 3
    %v423 = vperm.slane %v98, 3
    %v424 = vperm.slane %v99, 3
    %v425 = vmul.f32 %v420, %v421
    %v426 = vmul.f32 %v419, %v422
    %v427 = vmul.f32 %v418, %v423
    %v428 = vmul.f32 %v417, %v424
    %429 = vset.pattern.permute.xlu0 12
    %430 = vperm.xlu0 %429, %v93
    %v431 = vpop.permute.xlu0 %430
    %v433 = vperm.slane %v425, 0
    %v434 = vperm.slane %v426, 0
    %v435 = vperm.slane %v427, 0
    %v436 = vperm.slane %v428, 0
    %v437 = vmul.f32 %v431, %v433
    %v438 = vmul.f32 %v431, %v434
    %v439 = vmul.f32 %v431, %v435
    %v440 = vmul.f32 %v431, %v436
    %v441 = vadd.f32 %v393, %v437
    %v442 = vadd.f32 %v394, %v438
    %v443 = vadd.f32 %v395, %v439
    %v444 = vadd.f32 %v396, %v440
    %445 = vset.pattern.permute.xlu0 13
    %446 = vperm.xlu0 %445, %v93
    %v447 = vpop.permute.xlu0 %446
    %v449 = vperm.slane %v425, 1
    %v450 = vperm.slane %v426, 1
    %v451 = vperm.slane %v427, 1
    %v452 = vperm.slane %v428, 1
    %v453 = vmul.f32 %v447, %v449
    %v454 = vmul.f32 %v447, %v450
    %v455 = vmul.f32 %v447, %v451
    %v456 = vmul.f32 %v447, %v452
    %v457 = vadd.f32 %v441, %v453
    %v458 = vadd.f32 %v442, %v454
    %v459 = vadd.f32 %v443, %v455
    %v460 = vadd.f32 %v444, %v456
    %461 = vset.pattern.permute.xlu0 14
    %462 = vperm.xlu0 %461, %v93
    %v463 = vpop.permute.xlu0 %462
    %v465 = vperm.slane %v425, 2
    %v466 = vperm.slane %v426, 2
    %v467 = vperm.slane %v427, 2
    %v468 = vperm.slane %v428, 2
    %v469 = vmul.f32 %v463, %v465
    %v470 = vmul.f32 %v463, %v466
    %v471 = vmul.f32 %v463, %v467
    %v472 = vmul.f32 %v463, %v468
    %v473 = vadd.f32 %v457, %v469
    %v474 = vadd.f32 %v458, %v470
    %v475 = vadd.f32 %v459, %v471
    %v476 = vadd.f32 %v460, %v472
    %477 = vset.pattern.permute.xlu0 15
    %478 = vperm.xlu0 %477, %v93
    %v479 = vpop.permute.xlu0 %478
    %v481 = vperm.slane %v425, 3
    %v482 = vperm.slane %v426, 3
    %v483 = vperm.slane %v427, 3
    %v484 = vperm.slane %v428, 3
    %v485 = vmul.f32 %v479, %v481
    %v486 = vmul.f32 %v479, %v482
    %v487 = vmul.f32 %v479, %v483
    %v488 = vmul.f32 %v479, %v484
    %v489 = vadd.f32 %v473, %v485
    %v490 = vadd.f32 %v474, %v486
    %v491 = vadd.f32 %v475, %v487
    %v492 = vadd.f32 %v476, %v488
    %493 = vset.pattern.permute.xlu0 16
    %494 = vperm.xlu0 %493, %v93
    %v495 = vpop.permute.xlu0 %494
    %v497 = vperm.slane %v91, 0
    %v498 = vperm.slane %v91, 4
    %v499 = vperm.slane %v92, 0
    %v500 = vperm.slane %v92, 4
    %v505 = vperm.slane %v497, 0
    %v506 = vperm.slane %v498, 0
    %v507 = vperm.slane %v499, 0
    %v508 = vperm.slane %v500, 0
    %v509 = vmul.f32 %v495, %v505
    %v510 = vmul.f32 %v495, %v506
    %v511 = vmul.f32 %v495, %v507
    %v512 = vmul.f32 %v495, %v508
    %v513 = vadd.f32 %v489, %v509
    %v514 = vadd.f32 %v490, %v510
    %v515 = vadd.f32 %v491, %v511
    %v516 = vadd.f32 %v492, %v512
    %517 = vset.pattern.permute.xlu0 17
    %518 = vperm.xlu0 %517, %v93
    %v519 = vpop.permute.xlu0 %518
    %v521 = vperm.slane %v91, 1
    %v522 = vperm.slane %v91, 5
    %v523 = vperm.slane %v92, 1
    %v524 = vperm.slane %v92, 5
    %v529 = vperm.slane %v521, 1
    %v530 = vperm.slane %v522, 1
    %v531 = vperm.slane %v523, 1
    %v532 = vperm.slane %v524, 1
    %v533 = vmul.f32 %v519, %v529
    %v534 = vmul.f32 %v519, %v530
    %v535 = vmul.f32 %v519, %v531
    %v536 = vmul.f32 %v519, %v532
    %v537 = vadd.f32 %v513, %v533
    %v538 = vadd.f32 %v514, %v534
    %v539 = vadd.f32 %v515, %v535
    %v540 = vadd.f32 %v516, %v536
    %541 = vset.pattern.permute.xlu0 18
    %542 = vperm.xlu0 %541, %v93
    %v543 = vpop.permute.xlu0 %542
    %v545 = vperm.slane %v91, 2
    %v546 = vperm.slane %v91, 6
    %v547 = vperm.slane %v92, 2
    %v548 = vperm.slane %v92, 6
    %v553 = vperm.slane %v545, 2
    %v554 = vperm.slane %v546, 2
    %v555 = vperm.slane %v547, 2
    %v556 = vperm.slane %v548, 2
    %v557 = vmul.f32 %v543, %v553
    %v558 = vmul.f32 %v543, %v554
    %v559 = vmul.f32 %v543, %v555
    %v560 = vmul.f32 %v543, %v556
    %v561 = vadd.f32 %v537, %v557
    %v562 = vadd.f32 %v538, %v558
    %v563 = vadd.f32 %v539, %v559
    %v564 = vadd.f32 %v540, %v560
    %565 = vset.pattern.permute.xlu0 19
    %566 = vperm.xlu0 %565, %v93
    %v567 = vpop.permute.xlu0 %566
    %v569 = vperm.slane %v91, 3
    %v570 = vperm.slane %v91, 7
    %v571 = vperm.slane %v92, 3
    %v572 = vperm.slane %v92, 7
    %v577 = vperm.slane %v569, 3
    %v578 = vperm.slane %v570, 3
    %v579 = vperm.slane %v571, 3
    %v580 = vperm.slane %v572, 3
    %v581 = vmul.f32 %v567, %v577
    %v582 = vmul.f32 %v567, %v578
    %v583 = vmul.f32 %v567, %v579
    %v584 = vmul.f32 %v567, %v580
    %v585 = vadd.f32 %v561, %v581
    %v586 = vadd.f32 %v562, %v582
    %v587 = vadd.f32 %v563, %v583
    %v588 = vadd.f32 %v564, %v584
    %589 = vst [vmem:[#allocation1] ss:$2 sm:$0xff] %v91
    %s590 = scalar_lea.vmem [#allocation1], 16
    %591 = vst [vmem:[%s590] ss:$2 sm:$0xff] %v92
    %v592 = vld.sshfl [vmem:[#allocation1] sm:$0xff pattern:$0x75316420]
    %v593 = vld.sshfl [vmem:[#allocation1 + $0x8] sm:$0xff pattern:$0x75316420]
    %v594 = vld.sshfl [vmem:[#allocation1 + $0x10] sm:$0xff pattern:$0x75316420]
    %v595 = vld.sshfl [vmem:[#allocation1 + $0x18] sm:$0xff pattern:$0x75316420]
    %600 = vrot.lane.b32.xlu0 %v592, 127
    %v601 = vpop.permute.xlu0 %600
    %602 = vrot.lane.b32.xlu0 %v593, 127
    %v603 = vpop.permute.xlu0 %602
    %604 = vrot.lane.b32.xlu0 %v594, 127
    %v605 = vpop.permute.xlu0 %604
    %606 = vrot.lane.b32.xlu0 %v595, 127
    %v607 = vpop.permute.xlu0 %606
    %vm608 = vcmp.lt.s32.totalorder %v126, 127
    %v609 = vsel %vm608, %v605, %v607
    %v610 = vsel %vm608, %v603, %v605
    %v611 = vsel %vm608, %v601, %v603
    %v612 = vsel %vm608, %v607, %v601
    %v613 = vperm.slane %v96, 5
    %v614 = vperm.slane %v97, 5
    %v615 = vperm.slane %v98, 5
    %v616 = vperm.slane %v99, 5
    %v617 = vmul.f32 %v611, %v613
    %v618 = vmul.f32 %v610, %v614
    %v619 = vmul.f32 %v609, %v615
    %v620 = vmul.f32 %v612, %v616
    %621 = vset.pattern.permute.xlu0 20
    %622 = vperm.xlu0 %621, %v93
    %v623 = vpop.permute.xlu0 %622
    %v625 = vperm.slane %v617, 0
    %v626 = vperm.slane %v618, 0
    %v627 = vperm.slane %v619, 0
    %v628 = vperm.slane %v620, 0
    %v629 = vmul.f32 %v623, %v625
    %v630 = vmul.f32 %v623, %v626
    %v631 = vmul.f32 %v623, %v627
    %v632 = vmul.f32 %v623, %v628
    %v633 = vadd.f32 %v585, %v629
    %v634 = vadd.f32 %v586, %v630
    %v635 = vadd.f32 %v587, %v631
    %v636 = vadd.f32 %v588, %v632
    %637 = vset.pattern.permute.xlu0 21
    %638 = vperm.xlu0 %637, %v93
    %v639 = vpop.permute.xlu0 %638
    %v641 = vperm.slane %v617, 1
    %v642 = vperm.slane %v618, 1
    %v643 = vperm.slane %v619, 1
    %v644 = vperm.slane %v620, 1
    %v645 = vmul.f32 %v639, %v641
    %v646 = vmul.f32 %v639, %v642
    %v647 = vmul.f32 %v639, %v643
    %v648 = vmul.f32 %v639, %v644
    %v649 = vadd.f32 %v633, %v645
    %v650 = vadd.f32 %v634, %v646
    %v651 = vadd.f32 %v635, %v647
    %v652 = vadd.f32 %v636, %v648
    %653 = vset.pattern.permute.xlu0 22
    %654 = vperm.xlu0 %653, %v93
    %v655 = vpop.permute.xlu0 %654
    %v657 = vperm.slane %v617, 2
    %v658 = vperm.slane %v618, 2
    %v659 = vperm.slane %v619, 2
    %v660 = vperm.slane %v620, 2
    %v661 = vmul.f32 %v655, %v657
    %v662 = vmul.f32 %v655, %v658
    %v663 = vmul.f32 %v655, %v659
    %v664 = vmul.f32 %v655, %v660
    %v665 = vadd.f32 %v649, %v661
    %v666 = vadd.f32 %v650, %v662
    %v667 = vadd.f32 %v651, %v663
    %v668 = vadd.f32 %v652, %v664
    %669 = vset.pattern.permute.xlu0 23
    %670 = vperm.xlu0 %669, %v93
    %v671 = vpop.permute.xlu0 %670
    %v673 = vperm.slane %v617, 3
    %v674 = vperm.slane %v618, 3
    %v675 = vperm.slane %v619, 3
    %v676 = vperm.slane %v620, 3
    %v677 = vmul.f32 %v671, %v673
    %v678 = vmul.f32 %v671, %v674
    %v679 = vmul.f32 %v671, %v675
    %v680 = vmul.f32 %v671, %v676
    %v681 = vadd.f32 %v665, %v677
    %v682 = vadd.f32 %v666, %v678
    %v683 = vadd.f32 %v667, %v679
    %v684 = vadd.f32 %v668, %v680
    %685 = vst [vmem:[#allocation1] ss:$2 sm:$0xff] %v91
    %s686 = scalar_lea.vmem [#allocation1], 16
    %687 = vst [vmem:[%s686] ss:$2 sm:$0xff] %v92
    %v688 = vld.sshfl [vmem:[#allocation1] sm:$0xff pattern:$0x75316420]
    %v689 = vld.sshfl [vmem:[#allocation1 + $0x8] sm:$0xff pattern:$0x75316420]
    %v690 = vld.sshfl [vmem:[#allocation1 + $0x10] sm:$0xff pattern:$0x75316420]
    %v691 = vld.sshfl [vmem:[#allocation1 + $0x18] sm:$0xff pattern:$0x75316420]
    %696 = vrot.lane.b32.xlu0 %v688, 113
    %v697 = vpop.permute.xlu0 %696
    %698 = vrot.lane.b32.xlu0 %v689, 113
    %v699 = vpop.permute.xlu0 %698
    %700 = vrot.lane.b32.xlu0 %v690, 113
    %v701 = vpop.permute.xlu0 %700
    %702 = vrot.lane.b32.xlu0 %v691, 113
    %v703 = vpop.permute.xlu0 %702
    %vm704 = vcmp.lt.s32.totalorder %v126, 113
    %v705 = vsel %vm704, %v701, %v703
    %v706 = vsel %vm704, %v699, %v701
    %v707 = vsel %vm704, %v697, %v699
    %v708 = vsel %vm704, %v703, %v697
    %v709 = vperm.slane %v96, 6
    %v710 = vperm.slane %v97, 6
    %v711 = vperm.slane %v98, 6
    %v712 = vperm.slane %v99, 6
    %v713 = vmul.f32 %v707, %v709
    %v714 = vmul.f32 %v706, %v710
    %v715 = vmul.f32 %v705, %v711
    %v716 = vmul.f32 %v708, %v712
    %717 = vset.pattern.permute.xlu0 24
    %718 = vperm.xlu0 %717, %v93
    %v719 = vpop.permute.xlu0 %718
    %v721 = vperm.slane %v713, 0
    %v722 = vperm.slane %v714, 0
    %v723 = vperm.slane %v715, 0
    %v724 = vperm.slane %v716, 0
    %v725 = vmul.f32 %v719, %v721
    %v726 = vmul.f32 %v719, %v722
    %v727 = vmul.f32 %v719, %v723
    %v728 = vmul.f32 %v719, %v724
    %v729 = vadd.f32 %v681, %v725
    %v730 = vadd.f32 %v682, %v726
    %v731 = vadd.f32 %v683, %v727
    %v732 = vadd.f32 %v684, %v728
    %733 = vset.pattern.permute.xlu0 25
    %734 = vperm.xlu0 %733, %v93
    %v735 = vpop.permute.xlu0 %734
    %v737 = vperm.slane %v713, 1
    %v738 = vperm.slane %v714, 1
    %v739 = vperm.slane %v715, 1
    %v740 = vperm.slane %v716, 1
    %v741 = vmul.f32 %v735, %v737
    %v742 = vmul.f32 %v735, %v738
    %v743 = vmul.f32 %v735, %v739
    %v744 = vmul.f32 %v735, %v740
    %v745 = vadd.f32 %v729, %v741
    %v746 = vadd.f32 %v730, %v742
    %v747 = vadd.f32 %v731, %v743
    %v748 = vadd.f32 %v732, %v744
    %749 = vset.pattern.permute.xlu0 26
    %750 = vperm.xlu0 %749, %v93
    %v751 = vpop.permute.xlu0 %750
    %v753 = vperm.slane %v713, 2
    %v754 = vperm.slane %v714, 2
    %v755 = vperm.slane %v715, 2
    %v756 = vperm.slane %v716, 2
    %v757 = vmul.f32 %v751, %v753
    %v758 = vmul.f32 %v751, %v754
    %v759 = vmul.f32 %v751, %v755
    %v760 = vmul.f32 %v751, %v756
    %v761 = vadd.f32 %v745, %v757
    %v762 = vadd.f32 %v746, %v758
    %v763 = vadd.f32 %v747, %v759
    %v764 = vadd.f32 %v748, %v760
    %765 = vset.pattern.permute.xlu0 27
    %766 = vperm.xlu0 %765, %v93
    %v767 = vpop.permute.xlu0 %766
    %v769 = vperm.slane %v713, 3
    %v770 = vperm.slane %v714, 3
    %v771 = vperm.slane %v715, 3
    %v772 = vperm.slane %v716, 3
    %v773 = vmul.f32 %v767, %v769
    %v774 = vmul.f32 %v767, %v770
    %v775 = vmul.f32 %v767, %v771
    %v776 = vmul.f32 %v767, %v772
    %v777 = vadd.f32 %v761, %v773
    %v778 = vadd.f32 %v762, %v774
    %v779 = vadd.f32 %v763, %v775
    %v780 = vadd.f32 %v764, %v776
    %781 = vst [vmem:[#allocation1] ss:$2 sm:$0xff] %v91
    %s782 = scalar_lea.vmem [#allocation1], 16
    %783 = vst [vmem:[%s782] ss:$2 sm:$0xff] %v92
    %v784 = vld.sshfl [vmem:[#allocation1] sm:$0xff pattern:$0x75316420]
    %v785 = vld.sshfl [vmem:[#allocation1 + $0x8] sm:$0xff pattern:$0x75316420]
    %v786 = vld.sshfl [vmem:[#allocation1 + $0x10] sm:$0xff pattern:$0x75316420]
    %v787 = vld.sshfl [vmem:[#allocation1 + $0x18] sm:$0xff pattern:$0x75316420]
    %792 = vrot.lane.b32.xlu0 %v784, 112
    %v793 = vpop.permute.xlu0 %792
    %794 = vrot.lane.b32.xlu0 %v785, 112
    %v795 = vpop.permute.xlu0 %794
    %796 = vrot.lane.b32.xlu0 %v786, 112
    %v797 = vpop.permute.xlu0 %796
    %798 = vrot.lane.b32.xlu0 %v787, 112
    %v799 = vpop.permute.xlu0 %798
    %vm800 = vcmp.lt.s32.totalorder %v126, 112
    %v801 = vsel %vm800, %v797, %v799
    %v802 = vsel %vm800, %v795, %v797
    %v803 = vsel %vm800, %v793, %v795
    %v804 = vsel %vm800, %v799, %v793
    %v805 = vperm.slane %v96, 7
    %v806 = vperm.slane %v97, 7
    %v807 = vperm.slane %v98, 7
    %v808 = vperm.slane %v99, 7
    %v809 = vmul.f32 %v803, %v805
    %v810 = vmul.f32 %v802, %v806
    %v811 = vmul.f32 %v801, %v807
    %v812 = vmul.f32 %v804, %v808
    %813 = vset.pattern.permute.xlu0 28
    %814 = vperm.xlu0 %813, %v93
    %v815 = vpop.permute.xlu0 %814
    %v817 = vperm.slane %v809, 0
    %v818 = vperm.slane %v810, 0
    %v819 = vperm.slane %v811, 0
    %v820 = vperm.slane %v812, 0
    %v821 = vmul.f32 %v815, %v817
    %v822 = vmul.f32 %v815, %v818
    %v823 = vmul.f32 %v815, %v819
    %v824 = vmul.f32 %v815, %v820
    %v825 = vadd.f32 %v777, %v821
    %v826 = vadd.f32 %v778, %v822
    %v827 = vadd.f32 %v779, %v823
    %v828 = vadd.f32 %v780, %v824
    %829 = vset.pattern.permute.xlu0 29
    %830 = vperm.xlu0 %829, %v93
    %v831 = vpop.permute.xlu0 %830
    %v833 = vperm.slane %v809, 1
    %v834 = vperm.slane %v810, 1
    %v835 = vperm.slane %v811, 1
    %v836 = vperm.slane %v812, 1
    %v837 = vmul.f32 %v831, %v833
    %v838 = vmul.f32 %v831, %v834
    %v839 = vmul.f32 %v831, %v835
    %v840 = vmul.f32 %v831, %v836
    %v841 = vadd.f32 %v825, %v837
    %v842 = vadd.f32 %v826, %v838
    %v843 = vadd.f32 %v827, %v839
    %v844 = vadd.f32 %v828, %v840
    %845 = vset.pattern.permute.xlu0 30
    %846 = vperm.xlu0 %845, %v93
    %v847 = vpop.permute.xlu0 %846
    %v849 = vperm.slane %v809, 2
    %v850 = vperm.slane %v810, 2
    %v851 = vperm.slane %v811, 2
    %v852 = vperm.slane %v812, 2
    %v853 = vmul.f32 %v847, %v849
    %v854 = vmul.f32 %v847, %v850
    %v855 = vmul.f32 %v847, %v851
    %v856 = vmul.f32 %v847, %v852
    %v857 = vadd.f32 %v841, %v853
    %v858 = vadd.f32 %v842, %v854
    %v859 = vadd.f32 %v843, %v855
    %v860 = vadd.f32 %v844, %v856
    %861 = vset.pattern.permute.xlu0 31
    %862 = vperm.xlu0 %861, %v93
    %v863 = vpop.permute.xlu0 %862
    %v865 = vperm.slane %v809, 3
    %v866 = vperm.slane %v810, 3
    %v867 = vperm.slane %v811, 3
    %v868 = vperm.slane %v812, 3
    %v869 = vmul.f32 %v863, %v865
    %v870 = vmul.f32 %v863, %v866
    %v871 = vmul.f32 %v863, %v867
    %v872 = vmul.f32 %v863, %v868
    %v873 = vadd.f32 %v857, %v869
    %v874 = vadd.f32 %v858, %v870
    %v875 = vadd.f32 %v859, %v871
    %v876 = vadd.f32 %v860, %v872
    %877 = vst [vmem:[#allocation1] ss:$2 sm:$0xff] %v91
    %s878 = scalar_lea.vmem [#allocation1], 16
    %879 = vst [vmem:[%s878] ss:$2 sm:$0xff] %v92
    %v880 = vld.sshfl [vmem:[#allocation1] sm:$0xff pattern:$0x75316420]
    %v881 = vld.sshfl [vmem:[#allocation1 + $0x8] sm:$0xff pattern:$0x75316420]
    %v882 = vld.sshfl [vmem:[#allocation1 + $0x10] sm:$0xff pattern:$0x75316420]
    %v883 = vld.sshfl [vmem:[#allocation1 + $0x18] sm:$0xff pattern:$0x75316420]
    %888 = vrot.lane.b32.xlu0 %v880, 111
    %v889 = vpop.permute.xlu0 %888
    %890 = vrot.lane.b32.xlu0 %v881, 111
    %v891 = vpop.permute.xlu0 %890
    %892 = vrot.lane.b32.xlu0 %v882, 111
    %v893 = vpop.permute.xlu0 %892
    %894 = vrot.lane.b32.xlu0 %v883, 111
    %v895 = vpop.permute.xlu0 %894
    %vm896 = vcmp.lt.s32.totalorder %v126, 111
    %v897 = vsel %vm896, %v893, %v895
    %v898 = vsel %vm896, %v891, %v893
    %v899 = vsel %vm896, %v889, %v891
    %v900 = vsel %vm896, %v895, %v889
    %v901 = vperm.slane %v100, 0
    %v902 = vperm.slane %v101, 0
    %v903 = vperm.slane %v102, 0
    %v904 = vperm.slane %v103, 0
    %v905 = vmul.f32 %v899, %v901
    %v906 = vmul.f32 %v898, %v902
    %v907 = vmul.f32 %v897, %v903
    %v908 = vmul.f32 %v900, %v904
    %909 = vset.pattern.permute.xlu0 32
    %910 = vperm.xlu0 %909, %v93
    %v911 = vpop.permute.xlu0 %910
    %v913 = vperm.slane %v905, 0
    %v914 = vperm.slane %v906, 0
    %v915 = vperm.slane %v907, 0
    %v916 = vperm.slane %v908, 0
    %v917 = vmul.f32 %v911, %v913
    %v918 = vmul.f32 %v911, %v914
    %v919 = vmul.f32 %v911, %v915
    %v920 = vmul.f32 %v911, %v916
    %v921 = vadd.f32 %v873, %v917
    %v922 = vadd.f32 %v874, %v918
    %v923 = vadd.f32 %v875, %v919
    %v924 = vadd.f32 %v876, %v920
    %925 = vset.pattern.permute.xlu0 33
    %926 = vperm.xlu0 %925, %v93
    %v927 = vpop.permute.xlu0 %926
    %v929 = vperm.slane %v905, 1
    %v930 = vperm.slane %v906, 1
    %v931 = vperm.slane %v907, 1
    %v932 = vperm.slane %v908, 1
    %v933 = vmul.f32 %v927, %v929
    %v934 = vmul.f32 %v927, %v930
    %v935 = vmul.f32 %v927, %v931
    %v936 = vmul.f32 %v927, %v932
    %v937 = vadd.f32 %v921, %v933
    %v938 = vadd.f32 %v922, %v934
    %v939 = vadd.f32 %v923, %v935
    %v940 = vadd.f32 %v924, %v936
    %941 = vset.pattern.permute.xlu0 34
    %942 = vperm.xlu0 %941, %v93
    %v943 = vpop.permute.xlu0 %942
    %v945 = vperm.slane %v905, 2
    %v946 = vperm.slane %v906, 2
    %v947 = vperm.slane %v907, 2
    %v948 = vperm.slane %v908, 2
    %v949 = vmul.f32 %v943, %v945
    %v950 = vmul.f32 %v943, %v946
    %v951 = vmul.f32 %v943, %v947
    %v952 = vmul.f32 %v943, %v948
    %v953 = vadd.f32 %v937, %v949
    %v954 = vadd.f32 %v938, %v950
    %v955 = vadd.f32 %v939, %v951
    %v956 = vadd.f32 %v940, %v952
    %957 = vset.pattern.permute.xlu0 35
    %958 = vperm.xlu0 %957, %v93
    %v959 = vpop.permute.xlu0 %958
    %v961 = vperm.slane %v905, 3
    %v962 = vperm.slane %v906, 3
    %v963 = vperm.slane %v907, 3
    %v964 = vperm.slane %v908, 3
    %v965 = vmul.f32 %v959, %v961
    %v966 = vmul.f32 %v959, %v962
    %v967 = vmul.f32 %v959, %v963
    %v968 = vmul.f32 %v959, %v964
    %v969 = vadd.f32 %v953, %v965
    %v970 = vadd.f32 %v954, %v966
    %v971 = vadd.f32 %v955, %v967
    %v972 = vadd.f32 %v956, %v968
    %vm973 = vcmask 1043456
    %v974 = vsel %vm973, %v969, 0.0
    %v975 = vsel %vm973, %v970, 0.0
    %v976 = vadd.f32 %v974, %v975
    %v977 = vsel %vm973, %v971, 0.0
    %v978 = vadd.f32 %v976, %v977
    %v979 = vsel %vm973, %v972, 0.0
    %v980 = vadd.f32 %v978, %v979
    %981 = vadd.xlane.f32.xlu0 %v980
    %v982 = vpop.xlane.xlu0 %981
    %v983 = vmul.f32 %v982, 0.001953125
    %v984 = vmul.f32 %v969, %v969
    %v985 = vmul.f32 %v970, %v970
    %v986 = vmul.f32 %v971, %v971
    %v987 = vmul.f32 %v972, %v972
    %v988 = vsel %vm973, %v984, 0.0
    %v989 = vsel %vm973, %v985, 0.0
    %v990 = vadd.f32 %v988, %v989
    %v991 = vsel %vm973, %v986, 0.0
    %v992 = vadd.f32 %v990, %v991
    %v993 = vsel %vm973, %v987, 0.0
    %v994 = vadd.f32 %v992, %v993
    %995 = vadd.xlane.f32.xlu0 %v994
    %v996 = vpop.xlane.xlu0 %995
    %v997 = vmul.f32 %v996, 0.001953125
    %v998 = vmul.f32 %v983, %v983
    %v999 = vsub.f32 %v997, %v998
    %v1000 = vadd.f32 %v999, 1e-05
    %v1001 = vrsqrt.pop %v1000
    %v1002 = vmul.f32 %v1001, %v1000
    %v1003 = vmul.f32 %v1002, %v1001
    %v1004 = vmul.f32 0.5, %v1003
    %v1005 = vsub.f32 1.5, %v1004
    %v1006 = vmul.f32 %v1001, %v1005
    %vm1007 = vweird.f32 %v1000
    %vm1008 = vweird.f32 %v1001
    %vm1009 = vmor %vm1007, %vm1008
    %v1010 = vsel %vm1009, %v1001, %v1006
    %v1011 = vmul.f32 %v95, %v1010
    %1013 = vset.pattern.permute.xlu0 0
    %1014 = vperm.xlu0 %1013, %v1011
    %v1015 = vpop.permute.xlu0 %1014
    %v1017 = vmul.f32 %v969, %v1015
    %v1018 = vmul.f32 %v970, %v1015
    %v1019 = vmul.f32 %v971, %v1015
    %v1020 = vmul.f32 %v972, %v1015
    %v1021 = vmul.f32 %v983, %v1011
    %1023 = vrot.lane.b32.xlu0 %v1021, 1
    %v1024 = vpop.permute.xlu0 %1023
    %v1026 = vsub.f32 %v95, %v1024
    %1028 = vset.pattern.permute.xlu0 1
    %1029 = vperm.xlu0 %1028, %v1026
    %v1030 = vpop.permute.xlu0 %1029
    %v1032 = vadd.f32 %v1017, %v1030
    %v1033 = vadd.f32 %v1018, %v1030
    %v1034 = vadd.f32 %v1019, %v1030
    %v1035 = vadd.f32 %v1020, %v1030
    %v1036 = vmax.f32 %v1032, 0.0
    %v1037 = vmax.f32 %v1033, 0.0
    %v1038 = vmax.f32 %v1034, 0.0
    %v1039 = vmax.f32 %v1035, 0.0
    %1040 = vrot.lane.b32.xlu0 %v1036, 17
    %v1041 = vpop.permute.xlu0 %1040
    %1042 = vrot.lane.b32.xlu0 %v1037, 17
    %v1043 = vpop.permute.xlu0 %1042
    %1044 = vrot.lane.b32.xlu0 %v1038, 17
    %v1045 = vpop.permute.xlu0 %1044
    %1046 = vrot.lane.b32.xlu0 %v1039, 17
    %v1047 = vpop.permute.xlu0 %1046
    %v1048 = vsel %vm127, %v1045, %v1047
    %v1049 = vsel %vm127, %v1043, %v1045
    %v1050 = vsel %vm127, %v1041, %v1043
    %v1051 = vsel %vm127, %v1047, %v1041
    %v1052 = vmul.f32 %v1051, %v132
    %v1053 = vmul.f32 %v1050, %v133
    %v1054 = vmul.f32 %v1049, %v134
    %v1055 = vmul.f32 %v1048, %v135
    %1057 = vset.pattern.permute.xlu0 0
    %1058 = vperm.xlu0 %1057, %v94
    %v1059 = vpop.permute.xlu0 %1058
    %v1061 = vperm.slane %v1052, 0
    %v1062 = vperm.slane %v1053, 0
    %v1063 = vperm.slane %v1054, 0
    %v1064 = vperm.slane %v1055, 0
    %v1065 = vmul.f32 %v1059, %v1061
    %v1066 = vmul.f32 %v1059, %v1062
    %v1067 = vmul.f32 %v1059, %v1063
    %v1068 = vmul.f32 %v1059, %v1064
    %v1069 = vadd.f32 %v1065, 0.0
    %v1070 = vadd.f32 %v1066, 0.0
    %v1071 = vadd.f32 %v1067, 0.0
    %v1072 = vadd.f32 %v1068, 0.0
    %1073 = vset.pattern.permute.xlu0 1
    %1074 = vperm.xlu0 %1073, %v94
    %v1075 = vpop.permute.xlu0 %1074
    %v1077 = vperm.slane %v1052, 1
    %v1078 = vperm.slane %v1053, 1
    %v1079 = vperm.slane %v1054, 1
    %v1080 = vperm.slane %v1055, 1
    %v1081 = vmul.f32 %v1075, %v1077
    %v1082 = vmul.f32 %v1075, %v1078
    %v1083 = vmul.f32 %v1075, %v1079
    %v1084 = vmul.f32 %v1075, %v1080
    %v1085 = vadd.f32 %v1069, %v1081
    %v1086 = vadd.f32 %v1070, %v1082
    %v1087 = vadd.f32 %v1071, %v1083
    %v1088 = vadd.f32 %v1072, %v1084
    %1089 = vset.pattern.permute.xlu0 2
    %1090 = vperm.xlu0 %1089, %v94
    %v1091 = vpop.permute.xlu0 %1090
    %v1093 = vperm.slane %v1052, 2
    %v1094 = vperm.slane %v1053, 2
    %v1095 = vperm.slane %v1054, 2
    %v1096 = vperm.slane %v1055, 2
    %v1097 = vmul.f32 %v1091, %v1093
    %v1098 = vmul.f32 %v1091, %v1094
    %v1099 = vmul.f32 %v1091, %v1095
    %v1100 = vmul.f32 %v1091, %v1096
    %v1101 = vadd.f32 %v1085, %v1097
    %v1102 = vadd.f32 %v1086, %v1098
    %v1103 = vadd.f32 %v1087, %v1099
    %v1104 = vadd.f32 %v1088, %v1100
    %1105 = vset.pattern.permute.xlu0 3
    %1106 = vperm.xlu0 %1105, %v94
    %v1107 = vpop.permute.xlu0 %1106
    %v1109 = vperm.slane %v1052, 3
    %v1110 = vperm.slane %v1053, 3
    %v1111 = vperm.slane %v1054, 3
    %v1112 = vperm.slane %v1055, 3
    %v1113 = vmul.f32 %v1107, %v1109
    %v1114 = vmul.f32 %v1107, %v1110
    %v1115 = vmul.f32 %v1107, %v1111
    %v1116 = vmul.f32 %v1107, %v1112
    %v1117 = vadd.f32 %v1101, %v1113
    %v1118 = vadd.f32 %v1102, %v1114
    %v1119 = vadd.f32 %v1103, %v1115
    %v1120 = vadd.f32 %v1104, %v1116
    %1121 = vrot.lane.b32.xlu0 %v1036, 16
    %v1122 = vpop.permute.xlu0 %1121
    %1123 = vrot.lane.b32.xlu0 %v1037, 16
    %v1124 = vpop.permute.xlu0 %1123
    %1125 = vrot.lane.b32.xlu0 %v1038, 16
    %v1126 = vpop.permute.xlu0 %1125
    %1127 = vrot.lane.b32.xlu0 %v1039, 16
    %v1128 = vpop.permute.xlu0 %1127
    %v1129 = vsel %vm224, %v1126, %v1128
    %v1130 = vsel %vm224, %v1124, %v1126
    %v1131 = vsel %vm224, %v1122, %v1124
    %v1132 = vsel %vm224, %v1128, %v1122
    %v1133 = vmul.f32 %v1132, %v229
    %v1134 = vmul.f32 %v1131, %v230
    %v1135 = vmul.f32 %v1130, %v231
    %v1136 = vmul.f32 %v1129, %v232
    %1137 = vset.pattern.permute.xlu0 4
    %1138 = vperm.xlu0 %1137, %v94
    %v1139 = vpop.permute.xlu0 %1138
    %v1141 = vperm.slane %v1133, 0
    %v1142 = vperm.slane %v1134, 0
    %v1143 = vperm.slane %v1135, 0
    %v1144 = vperm.slane %v1136, 0
    %v1145 = vmul.f32 %v1139, %v1141
    %v1146 = vmul.f32 %v1139, %v1142
    %v1147 = vmul.f32 %v1139, %v1143
    %v1148 = vmul.f32 %v1139, %v1144
    %v1149 = vadd.f32 %v1117, %v1145
    %v1150 = vadd.f32 %v1118, %v1146
    %v1151 = vadd.f32 %v1119, %v1147
    %v1152 = vadd.f32 %v1120, %v1148
    %1153 = vset.pattern.permute.xlu0 5
    %1154 = vperm.xlu0 %1153, %v94
    %v1155 = vpop.permute.xlu0 %1154
    %v1157 = vperm.slane %v1133, 1
    %v1158 = vperm.slane %v1134, 1
    %v1159 = vperm.slane %v1135, 1
    %v1160 = vperm.slane %v1136, 1
    %v1161 = vmul.f32 %v1155, %v1157
    %v1162 = vmul.f32 %v1155, %v1158
    %v1163 = vmul.f32 %v1155, %v1159
    %v1164 = vmul.f32 %v1155, %v1160
    %v1165 = vadd.f32 %v1149, %v1161
    %v1166 = vadd.f32 %v1150, %v1162
    %v1167 = vadd.f32 %v1151, %v1163
    %v1168 = vadd.f32 %v1152, %v1164
    %1169 = vset.pattern.permute.xlu0 6
    %1170 = vperm.xlu0 %1169, %v94
    %v1171 = vpop.permute.xlu0 %1170
    %v1173 = vperm.slane %v1133, 2
    %v1174 = vperm.slane %v1134, 2
    %v1175 = vperm.slane %v1135, 2
    %v1176 = vperm.slane %v1136, 2
    %v1177 = vmul.f32 %v1171, %v1173
    %v1178 = vmul.f32 %v1171, %v1174
    %v1179 = vmul.f32 %v1171, %v1175
    %v1180 = vmul.f32 %v1171, %v1176
    %v1181 = vadd.f32 %v1165, %v1177
    %v1182 = vadd.f32 %v1166, %v1178
    %v1183 = vadd.f32 %v1167, %v1179
    %v1184 = vadd.f32 %v1168, %v1180
    %1185 = vset.pattern.permute.xlu0 7
    %1186 = vperm.xlu0 %1185, %v94
    %v1187 = vpop.permute.xlu0 %1186
    %v1189 = vperm.slane %v1133, 3
    %v1190 = vperm.slane %v1134, 3
    %v1191 = vperm.slane %v1135, 3
    %v1192 = vperm.slane %v1136, 3
    %v1193 = vmul.f32 %v1187, %v1189
    %v1194 = vmul.f32 %v1187, %v1190
    %v1195 = vmul.f32 %v1187, %v1191
    %v1196 = vmul.f32 %v1187, %v1192
    %v1197 = vadd.f32 %v1181, %v1193
    %v1198 = vadd.f32 %v1182, %v1194
    %v1199 = vadd.f32 %v1183, %v1195
    %v1200 = vadd.f32 %v1184, %v1196
    %1201 = vrot.lane.b32.xlu0 %v1036, 15
    %v1202 = vpop.permute.xlu0 %1201
    %1203 = vrot.lane.b32.xlu0 %v1037, 15
    %v1204 = vpop.permute.xlu0 %1203
    %1205 = vrot.lane.b32.xlu0 %v1038, 15
    %v1206 = vpop.permute.xlu0 %1205
    %1207 = vrot.lane.b32.xlu0 %v1039, 15
    %v1208 = vpop.permute.xlu0 %1207
    %v1209 = vsel %vm320, %v1206, %v1208
    %v1210 = vsel %vm320, %v1204, %v1206
    %v1211 = vsel %vm320, %v1202, %v1204
    %v1212 = vsel %vm320, %v1208, %v1202
    %v1213 = vmul.f32 %v1212, %v325
    %v1214 = vmul.f32 %v1211, %v326
    %v1215 = vmul.f32 %v1210, %v327
    %v1216 = vmul.f32 %v1209, %v328
    %1217 = vset.pattern.permute.xlu0 8
    %1218 = vperm.xlu0 %1217, %v94
    %v1219 = vpop.permute.xlu0 %1218
    %v1221 = vperm.slane %v1213, 0
    %v1222 = vperm.slane %v1214, 0
    %v1223 = vperm.slane %v1215, 0
    %v1224 = vperm.slane %v1216, 0
    %v1225 = vmul.f32 %v1219, %v1221
    %v1226 = vmul.f32 %v1219, %v1222
    %v1227 = vmul.f32 %v1219, %v1223
    %v1228 = vmul.f32 %v1219, %v1224
    %v1229 = vadd.f32 %v1197, %v1225
    %v1230 = vadd.f32 %v1198, %v1226
    %v1231 = vadd.f32 %v1199, %v1227
    %v1232 = vadd.f32 %v1200, %v1228
    %1233 = vset.pattern.permute.xlu0 9
    %1234 = vperm.xlu0 %1233, %v94
    %v1235 = vpop.permute.xlu0 %1234
    %v1237 = vperm.slane %v1213, 1
    %v1238 = vperm.slane %v1214, 1
    %v1239 = vperm.slane %v1215, 1
    %v1240 = vperm.slane %v1216, 1
    %v1241 = vmul.f32 %v1235, %v1237
    %v1242 = vmul.f32 %v1235, %v1238
    %v1243 = vmul.f32 %v1235, %v1239
    %v1244 = vmul.f32 %v1235, %v1240
    %v1245 = vadd.f32 %v1229, %v1241
    %v1246 = vadd.f32 %v1230, %v1242
    %v1247 = vadd.f32 %v1231, %v1243
    %v1248 = vadd.f32 %v1232, %v1244
    %1249 = vset.pattern.permute.xlu0 10
    %1250 = vperm.xlu0 %1249, %v94
    %v1251 = vpop.permute.xlu0 %1250
    %v1253 = vperm.slane %v1213, 2
    %v1254 = vperm.slane %v1214, 2
    %v1255 = vperm.slane %v1215, 2
    %v1256 = vperm.slane %v1216, 2
    %v1257 = vmul.f32 %v1251, %v1253
    %v1258 = vmul.f32 %v1251, %v1254
    %v1259 = vmul.f32 %v1251, %v1255
    %v1260 = vmul.f32 %v1251, %v1256
    %v1261 = vadd.f32 %v1245, %v1257
    %v1262 = vadd.f32 %v1246, %v1258
    %v1263 = vadd.f32 %v1247, %v1259
    %v1264 = vadd.f32 %v1248, %v1260
    %1265 = vset.pattern.permute.xlu0 11
    %1266 = vperm.xlu0 %1265, %v94
    %v1267 = vpop.permute.xlu0 %1266
    %v1269 = vperm.slane %v1213, 3
    %v1270 = vperm.slane %v1214, 3
    %v1271 = vperm.slane %v1215, 3
    %v1272 = vperm.slane %v1216, 3
    %v1273 = vmul.f32 %v1267, %v1269
    %v1274 = vmul.f32 %v1267, %v1270
    %v1275 = vmul.f32 %v1267, %v1271
    %v1276 = vmul.f32 %v1267, %v1272
    %v1277 = vadd.f32 %v1261, %v1273
    %v1278 = vadd.f32 %v1262, %v1274
    %v1279 = vadd.f32 %v1263, %v1275
    %v1280 = vadd.f32 %v1264, %v1276
    %1281 = vrot.lane.b32.xlu0 %v1036, 1
    %v1282 = vpop.permute.xlu0 %1281
    %1283 = vrot.lane.b32.xlu0 %v1037, 1
    %v1284 = vpop.permute.xlu0 %1283
    %1285 = vrot.lane.b32.xlu0 %v1038, 1
    %v1286 = vpop.permute.xlu0 %1285
    %1287 = vrot.lane.b32.xlu0 %v1039, 1
    %v1288 = vpop.permute.xlu0 %1287
    %v1289 = vsel %vm416, %v1286, %v1288
    %v1290 = vsel %vm416, %v1284, %v1286
    %v1291 = vsel %vm416, %v1282, %v1284
    %v1292 = vsel %vm416, %v1288, %v1282
    %v1293 = vmul.f32 %v1292, %v421
    %v1294 = vmul.f32 %v1291, %v422
    %v1295 = vmul.f32 %v1290, %v423
    %v1296 = vmul.f32 %v1289, %v424
    %1297 = vset.pattern.permute.xlu0 12
    %1298 = vperm.xlu0 %1297, %v94
    %v1299 = vpop.permute.xlu0 %1298
    %v1301 = vperm.slane %v1293, 0
    %v1302 = vperm.slane %v1294, 0
    %v1303 = vperm.slane %v1295, 0
    %v1304 = vperm.slane %v1296, 0
    %v1305 = vmul.f32 %v1299, %v1301
    %v1306 = vmul.f32 %v1299, %v1302
    %v1307 = vmul.f32 %v1299, %v1303
    %v1308 = vmul.f32 %v1299, %v1304
    %v1309 = vadd.f32 %v1277, %v1305
    %v1310 = vadd.f32 %v1278, %v1306
    %v1311 = vadd.f32 %v1279, %v1307
    %v1312 = vadd.f32 %v1280, %v1308
    %1313 = vset.pattern.permute.xlu0 13
    %1314 = vperm.xlu0 %1313, %v94
    %v1315 = vpop.permute.xlu0 %1314
    %v1317 = vperm.slane %v1293, 1
    %v1318 = vperm.slane %v1294, 1
    %v1319 = vperm.slane %v1295, 1
    %v1320 = vperm.slane %v1296, 1
    %v1321 = vmul.f32 %v1315, %v1317
    %v1322 = vmul.f32 %v1315, %v1318
    %v1323 = vmul.f32 %v1315, %v1319
    %v1324 = vmul.f32 %v1315, %v1320
    %v1325 = vadd.f32 %v1309, %v1321
    %v1326 = vadd.f32 %v1310, %v1322
    %v1327 = vadd.f32 %v1311, %v1323
    %v1328 = vadd.f32 %v1312, %v1324
    %1329 = vset.pattern.permute.xlu0 14
    %1330 = vperm.xlu0 %1329, %v94
    %v1331 = vpop.permute.xlu0 %1330
    %v1333 = vperm.slane %v1293, 2
    %v1334 = vperm.slane %v1294, 2
    %v1335 = vperm.slane %v1295, 2
    %v1336 = vperm.slane %v1296, 2
    %v1337 = vmul.f32 %v1331, %v1333
    %v1338 = vmul.f32 %v1331, %v1334
    %v1339 = vmul.f32 %v1331, %v1335
    %v1340 = vmul.f32 %v1331, %v1336
    %v1341 = vadd.f32 %v1325, %v1337
    %v1342 = vadd.f32 %v1326, %v1338
    %v1343 = vadd.f32 %v1327, %v1339
    %v1344 = vadd.f32 %v1328, %v1340
    %1345 = vset.pattern.permute.xlu0 15
    %1346 = vperm.xlu0 %1345, %v94
    %v1347 = vpop.permute.xlu0 %1346
    %v1349 = vperm.slane %v1293, 3
    %v1350 = vperm.slane %v1294, 3
    %v1351 = vperm.slane %v1295, 3
    %v1352 = vperm.slane %v1296, 3
    %v1353 = vmul.f32 %v1347, %v1349
    %v1354 = vmul.f32 %v1347, %v1350
    %v1355 = vmul.f32 %v1347, %v1351
    %v1356 = vmul.f32 %v1347, %v1352
    %v1357 = vadd.f32 %v1341, %v1353
    %v1358 = vadd.f32 %v1342, %v1354
    %v1359 = vadd.f32 %v1343, %v1355
    %v1360 = vadd.f32 %v1344, %v1356
    %1361 = vset.pattern.permute.xlu0 16
    %1362 = vperm.xlu0 %1361, %v94
    %v1363 = vpop.permute.xlu0 %1362
    %v1365 = vperm.slane %v1036, 0
    %v1366 = vperm.slane %v1037, 0
    %v1367 = vperm.slane %v1038, 0
    %v1368 = vperm.slane %v1039, 0
    %v1369 = vmul.f32 %v1363, %v1365
    %v1370 = vmul.f32 %v1363, %v1366
    %v1371 = vmul.f32 %v1363, %v1367
    %v1372 = vmul.f32 %v1363, %v1368
    %v1373 = vadd.f32 %v1357, %v1369
    %v1374 = vadd.f32 %v1358, %v1370
    %v1375 = vadd.f32 %v1359, %v1371
    %v1376 = vadd.f32 %v1360, %v1372
    %1377 = vset.pattern.permute.xlu0 17
    %1378 = vperm.xlu0 %1377, %v94
    %v1379 = vpop.permute.xlu0 %1378
    %v1381 = vperm.slane %v1036, 1
    %v1382 = vperm.slane %v1037, 1
    %v1383 = vperm.slane %v1038, 1
    %v1384 = vperm.slane %v1039, 1
    %v1385 = vmul.f32 %v1379, %v1381
    %v1386 = vmul.f32 %v1379, %v1382
    %v1387 = vmul.f32 %v1379, %v1383
    %v1388 = vmul.f32 %v1379, %v1384
    %v1389 = vadd.f32 %v1373, %v1385
    %v1390 = vadd.f32 %v1374, %v1386
    %v1391 = vadd.f32 %v1375, %v1387
    %v1392 = vadd.f32 %v1376, %v1388
    %1393 = vset.pattern.permute.xlu0 18
    %1394 = vperm.xlu0 %1393, %v94
    %v1395 = vpop.permute.xlu0 %1394
    %v1397 = vperm.slane %v1036, 2
    %v1398 = vperm.slane %v1037, 2
    %v1399 = vperm.slane %v1038, 2
    %v1400 = vperm.slane %v1039, 2
    %v1401 = vmul.f32 %v1395, %v1397
    %v1402 = vmul.f32 %v1395, %v1398
    %v1403 = vmul.f32 %v1395, %v1399
    %v1404 = vmul.f32 %v1395, %v1400
    %v1405 = vadd.f32 %v1389, %v1401
    %v1406 = vadd.f32 %v1390, %v1402
    %v1407 = vadd.f32 %v1391, %v1403
    %v1408 = vadd.f32 %v1392, %v1404
    %1409 = vset.pattern.permute.xlu0 19
    %1410 = vperm.xlu0 %1409, %v94
    %v1411 = vpop.permute.xlu0 %1410
    %v1413 = vperm.slane %v1036, 3
    %v1414 = vperm.slane %v1037, 3
    %v1415 = vperm.slane %v1038, 3
    %v1416 = vperm.slane %v1039, 3
    %v1417 = vmul.f32 %v1411, %v1413
    %v1418 = vmul.f32 %v1411, %v1414
    %v1419 = vmul.f32 %v1411, %v1415
    %v1420 = vmul.f32 %v1411, %v1416
    %v1421 = vadd.f32 %v1405, %v1417
    %v1422 = vadd.f32 %v1406, %v1418
    %v1423 = vadd.f32 %v1407, %v1419
    %v1424 = vadd.f32 %v1408, %v1420
    %1425 = vrot.lane.b32.xlu0 %v1036, 127
    %v1426 = vpop.permute.xlu0 %1425
    %1427 = vrot.lane.b32.xlu0 %v1037, 127
    %v1428 = vpop.permute.xlu0 %1427
    %1429 = vrot.lane.b32.xlu0 %v1038, 127
    %v1430 = vpop.permute.xlu0 %1429
    %1431 = vrot.lane.b32.xlu0 %v1039, 127
    %v1432 = vpop.permute.xlu0 %1431
    %v1433 = vsel %vm608, %v1430, %v1432
    %v1434 = vsel %vm608, %v1428, %v1430
    %v1435 = vsel %vm608, %v1426, %v1428
    %v1436 = vsel %vm608, %v1432, %v1426
    %v1437 = vmul.f32 %v1435, %v613
    %v1438 = vmul.f32 %v1434, %v614
    %v1439 = vmul.f32 %v1433, %v615
    %v1440 = vmul.f32 %v1436, %v616
    %1441 = vset.pattern.permute.xlu0 20
    %1442 = vperm.xlu0 %1441, %v94
    %v1443 = vpop.permute.xlu0 %1442
    %v1445 = vperm.slane %v1437, 0
    %v1446 = vperm.slane %v1438, 0
    %v1447 = vperm.slane %v1439, 0
    %v1448 = vperm.slane %v1440, 0
    %v1449 = vmul.f32 %v1443, %v1445
    %v1450 = vmul.f32 %v1443, %v1446
    %v1451 = vmul.f32 %v1443, %v1447
    %v1452 = vmul.f32 %v1443, %v1448
    %v1453 = vadd.f32 %v1421, %v1449
    %v1454 = vadd.f32 %v1422, %v1450
    %v1455 = vadd.f32 %v1423, %v1451
    %v1456 = vadd.f32 %v1424, %v1452
    %1457 = vset.pattern.permute.xlu0 21
    %1458 = vperm.xlu0 %1457, %v94
    %v1459 = vpop.permute.xlu0 %1458
    %v1461 = vperm.slane %v1437, 1
    %v1462 = vperm.slane %v1438, 1
    %v1463 = vperm.slane %v1439, 1
    %v1464 = vperm.slane %v1440, 1
    %v1465 = vmul.f32 %v1459, %v1461
    %v1466 = vmul.f32 %v1459, %v1462
    %v1467 = vmul.f32 %v1459, %v1463
    %v1468 = vmul.f32 %v1459, %v1464
    %v1469 = vadd.f32 %v1453, %v1465
    %v1470 = vadd.f32 %v1454, %v1466
    %v1471 = vadd.f32 %v1455, %v1467
    %v1472 = vadd.f32 %v1456, %v1468
    %1473 = vset.pattern.permute.xlu0 22
    %1474 = vperm.xlu0 %1473, %v94
    %v1475 = vpop.permute.xlu0 %1474
    %v1477 = vperm.slane %v1437, 2
    %v1478 = vperm.slane %v1438, 2
    %v1479 = vperm.slane %v1439, 2
    %v1480 = vperm.slane %v1440, 2
    %v1481 = vmul.f32 %v1475, %v1477
    %v1482 = vmul.f32 %v1475, %v1478
    %v1483 = vmul.f32 %v1475, %v1479
    %v1484 = vmul.f32 %v1475, %v1480
    %v1485 = vadd.f32 %v1469, %v1481
    %v1486 = vadd.f32 %v1470, %v1482
    %v1487 = vadd.f32 %v1471, %v1483
    %v1488 = vadd.f32 %v1472, %v1484
    %1489 = vset.pattern.permute.xlu0 23
    %1490 = vperm.xlu0 %1489, %v94
    %v1491 = vpop.permute.xlu0 %1490
    %v1493 = vperm.slane %v1437, 3
    %v1494 = vperm.slane %v1438, 3
    %v1495 = vperm.slane %v1439, 3
    %v1496 = vperm.slane %v1440, 3
    %v1497 = vmul.f32 %v1491, %v1493
    %v1498 = vmul.f32 %v1491, %v1494
    %v1499 = vmul.f32 %v1491, %v1495
    %v1500 = vmul.f32 %v1491, %v1496
    %v1501 = vadd.f32 %v1485, %v1497
    %v1502 = vadd.f32 %v1486, %v1498
    %v1503 = vadd.f32 %v1487, %v1499
    %v1504 = vadd.f32 %v1488, %v1500
    %1505 = vrot.lane.b32.xlu0 %v1036, 113
    %v1506 = vpop.permute.xlu0 %1505
    %1507 = vrot.lane.b32.xlu0 %v1037, 113
    %v1508 = vpop.permute.xlu0 %1507
    %1509 = vrot.lane.b32.xlu0 %v1038, 113
    %v1510 = vpop.permute.xlu0 %1509
    %1511 = vrot.lane.b32.xlu0 %v1039, 113
    %v1512 = vpop.permute.xlu0 %1511
    %v1513 = vsel %vm704, %v1510, %v1512
    %v1514 = vsel %vm704, %v1508, %v1510
    %v1515 = vsel %vm704, %v1506, %v1508
    %v1516 = vsel %vm704, %v1512, %v1506
    %v1517 = vmul.f32 %v1515, %v709
    %v1518 = vmul.f32 %v1514, %v710
    %v1519 = vmul.f32 %v1513, %v711
    %v1520 = vmul.f32 %v1516, %v712
    %1521 = vset.pattern.permute.xlu0 24
    %1522 = vperm.xlu0 %1521, %v94
    %v1523 = vpop.permute.xlu0 %1522
    %v1525 = vperm.slane %v1517, 0
    %v1526 = vperm.slane %v1518, 0
    %v1527 = vperm.slane %v1519, 0
    %v1528 = vperm.slane %v1520, 0
    %v1529 = vmul.f32 %v1523, %v1525
    %v1530 = vmul.f32 %v1523, %v1526
    %v1531 = vmul.f32 %v1523, %v1527
    %v1532 = vmul.f32 %v1523, %v1528
    %v1533 = vadd.f32 %v1501, %v1529
    %v1534 = vadd.f32 %v1502, %v1530
    %v1535 = vadd.f32 %v1503, %v1531
    %v1536 = vadd.f32 %v1504, %v1532
    %1537 = vset.pattern.permute.xlu0 25
    %1538 = vperm.xlu0 %1537, %v94
    %v1539 = vpop.permute.xlu0 %1538
    %v1541 = vperm.slane %v1517, 1
    %v1542 = vperm.slane %v1518, 1
    %v1543 = vperm.slane %v1519, 1
    %v1544 = vperm.slane %v1520, 1
    %v1545 = vmul.f32 %v1539, %v1541
    %v1546 = vmul.f32 %v1539, %v1542
    %v1547 = vmul.f32 %v1539, %v1543
    %v1548 = vmul.f32 %v1539, %v1544
    %v1549 = vadd.f32 %v1533, %v1545
    %v1550 = vadd.f32 %v1534, %v1546
    %v1551 = vadd.f32 %v1535, %v1547
    %v1552 = vadd.f32 %v1536, %v1548
    %1553 = vset.pattern.permute.xlu0 26
    %1554 = vperm.xlu0 %1553, %v94
    %v1555 = vpop.permute.xlu0 %1554
    %v1557 = vperm.slane %v1517, 2
    %v1558 = vperm.slane %v1518, 2
    %v1559 = vperm.slane %v1519, 2
    %v1560 = vperm.slane %v1520, 2
    %v1561 = vmul.f32 %v1555, %v1557
    %v1562 = vmul.f32 %v1555, %v1558
    %v1563 = vmul.f32 %v1555, %v1559
    %v1564 = vmul.f32 %v1555, %v1560
    %v1565 = vadd.f32 %v1549, %v1561
    %v1566 = vadd.f32 %v1550, %v1562
    %v1567 = vadd.f32 %v1551, %v1563
    %v1568 = vadd.f32 %v1552, %v1564
    %1569 = vset.pattern.permute.xlu0 27
    %1570 = vperm.xlu0 %1569, %v94
    %v1571 = vpop.permute.xlu0 %1570
    %v1573 = vperm.slane %v1517, 3
    %v1574 = vperm.slane %v1518, 3
    %v1575 = vperm.slane %v1519, 3
    %v1576 = vperm.slane %v1520, 3
    %v1577 = vmul.f32 %v1571, %v1573
    %v1578 = vmul.f32 %v1571, %v1574
    %v1579 = vmul.f32 %v1571, %v1575
    %v1580 = vmul.f32 %v1571, %v1576
    %v1581 = vadd.f32 %v1565, %v1577
    %v1582 = vadd.f32 %v1566, %v1578
    %v1583 = vadd.f32 %v1567, %v1579
    %v1584 = vadd.f32 %v1568, %v1580
    %1585 = vrot.lane.b32.xlu0 %v1036, 112
    %v1586 = vpop.permute.xlu0 %1585
    %1587 = vrot.lane.b32.xlu0 %v1037, 112
    %v1588 = vpop.permute.xlu0 %1587
    %1589 = vrot.lane.b32.xlu0 %v1038, 112
    %v1590 = vpop.permute.xlu0 %1589
    %1591 = vrot.lane.b32.xlu0 %v1039, 112
    %v1592 = vpop.permute.xlu0 %1591
    %v1593 = vsel %vm800, %v1590, %v1592
    %v1594 = vsel %vm800, %v1588, %v1590
    %v1595 = vsel %vm800, %v1586, %v1588
    %v1596 = vsel %vm800, %v1592, %v1586
    %v1597 = vmul.f32 %v1595, %v805
    %v1598 = vmul.f32 %v1594, %v806
    %v1599 = vmul.f32 %v1593, %v807
    %v1600 = vmul.f32 %v1596, %v808
    %1601 = vset.pattern.permute.xlu0 28
    %1602 = vperm.xlu0 %1601, %v94
    %v1603 = vpop.permute.xlu0 %1602
    %v1605 = vperm.slane %v1597, 0
    %v1606 = vperm.slane %v1598, 0
    %v1607 = vperm.slane %v1599, 0
    %v1608 = vperm.slane %v1600, 0
    %v1609 = vmul.f32 %v1603, %v1605
    %v1610 = vmul.f32 %v1603, %v1606
    %v1611 = vmul.f32 %v1603, %v1607
    %v1612 = vmul.f32 %v1603, %v1608
    %v1613 = vadd.f32 %v1581, %v1609
    %v1614 = vadd.f32 %v1582, %v1610
    %v1615 = vadd.f32 %v1583, %v1611
    %v1616 = vadd.f32 %v1584, %v1612
    %1617 = vset.pattern.permute.xlu0 29
    %1618 = vperm.xlu0 %1617, %v94
    %v1619 = vpop.permute.xlu0 %1618
    %v1621 = vperm.slane %v1597, 1
    %v1622 = vperm.slane %v1598, 1
    %v1623 = vperm.slane %v1599, 1
    %v1624 = vperm.slane %v1600, 1
    %v1625 = vmul.f32 %v1619, %v1621
    %v1626 = vmul.f32 %v1619, %v1622
    %v1627 = vmul.f32 %v1619, %v1623
    %v1628 = vmul.f32 %v1619, %v1624
    %v1629 = vadd.f32 %v1613, %v1625
    %v1630 = vadd.f32 %v1614, %v1626
    %v1631 = vadd.f32 %v1615, %v1627
    %v1632 = vadd.f32 %v1616, %v1628
    %1633 = vset.pattern.permute.xlu0 30
    %1634 = vperm.xlu0 %1633, %v94
    %v1635 = vpop.permute.xlu0 %1634
    %v1637 = vperm.slane %v1597, 2
    %v1638 = vperm.slane %v1598, 2
    %v1639 = vperm.slane %v1599, 2
    %v1640 = vperm.slane %v1600, 2
    %v1641 = vmul.f32 %v1635, %v1637
    %v1642 = vmul.f32 %v1635, %v1638
    %v1643 = vmul.f32 %v1635, %v1639
    %v1644 = vmul.f32 %v1635, %v1640
    %v1645 = vadd.f32 %v1629, %v1641
    %v1646 = vadd.f32 %v1630, %v1642
    %v1647 = vadd.f32 %v1631, %v1643
    %v1648 = vadd.f32 %v1632, %v1644
    %1649 = vset.pattern.permute.xlu0 31
    %1650 = vperm.xlu0 %1649, %v94
    %v1651 = vpop.permute.xlu0 %1650
    %v1653 = vperm.slane %v1597, 3
    %v1654 = vperm.slane %v1598, 3
    %v1655 = vperm.slane %v1599, 3
    %v1656 = vperm.slane %v1600, 3
    %v1657 = vmul.f32 %v1651, %v1653
    %v1658 = vmul.f32 %v1651, %v1654
    %v1659 = vmul.f32 %v1651, %v1655
    %v1660 = vmul.f32 %v1651, %v1656
    %v1661 = vadd.f32 %v1645, %v1657
    %v1662 = vadd.f32 %v1646, %v1658
    %v1663 = vadd.f32 %v1647, %v1659
    %v1664 = vadd.f32 %v1648, %v1660
    %1665 = vrot.lane.b32.xlu0 %v1036, 111
    %v1666 = vpop.permute.xlu0 %1665
    %1667 = vrot.lane.b32.xlu0 %v1037, 111
    %v1668 = vpop.permute.xlu0 %1667
    %1669 = vrot.lane.b32.xlu0 %v1038, 111
    %v1670 = vpop.permute.xlu0 %1669
    %1671 = vrot.lane.b32.xlu0 %v1039, 111
    %v1672 = vpop.permute.xlu0 %1671
    %v1673 = vsel %vm896, %v1670, %v1672
    %v1674 = vsel %vm896, %v1668, %v1670
    %v1675 = vsel %vm896, %v1666, %v1668
    %v1676 = vsel %vm896, %v1672, %v1666
    %v1677 = vmul.f32 %v1675, %v901
    %v1678 = vmul.f32 %v1674, %v902
    %v1679 = vmul.f32 %v1673, %v903
    %v1680 = vmul.f32 %v1676, %v904
    %1681 = vset.pattern.permute.xlu0 32
    %1682 = vperm.xlu0 %1681, %v94
    %v1683 = vpop.permute.xlu0 %1682
    %v1685 = vperm.slane %v1677, 0
    %v1686 = vperm.slane %v1678, 0
    %v1687 = vperm.slane %v1679, 0
    %v1688 = vperm.slane %v1680, 0
    %v1689 = vmul.f32 %v1683, %v1685
    %v1690 = vmul.f32 %v1683, %v1686
    %v1691 = vmul.f32 %v1683, %v1687
    %v1692 = vmul.f32 %v1683, %v1688
    %v1693 = vadd.f32 %v1661, %v1689
    %v1694 = vadd.f32 %v1662, %v1690
    %v1695 = vadd.f32 %v1663, %v1691
    %v1696 = vadd.f32 %v1664, %v1692
    %1697 = vset.pattern.permute.xlu0 33
    %1698 = vperm.xlu0 %1697, %v94
    %v1699 = vpop.permute.xlu0 %1698
    %v1701 = vperm.slane %v1677, 1
    %v1702 = vperm.slane %v1678, 1
    %v1703 = vperm.slane %v1679, 1
    %v1704 = vperm.slane %v1680, 1
    %v1705 = vmul.f32 %v1699, %v1701
    %v1706 = vmul.f32 %v1699, %v1702
    %v1707 = vmul.f32 %v1699, %v1703
    %v1708 = vmul.f32 %v1699, %v1704
    %v1709 = vadd.f32 %v1693, %v1705
    %v1710 = vadd.f32 %v1694, %v1706
    %v1711 = vadd.f32 %v1695, %v1707
    %v1712 = vadd.f32 %v1696, %v1708
    %1713 = vset.pattern.permute.xlu0 34
    %1714 = vperm.xlu0 %1713, %v94
    %v1715 = vpop.permute.xlu0 %1714
    %v1717 = vperm.slane %v1677, 2
    %v1718 = vperm.slane %v1678, 2
    %v1719 = vperm.slane %v1679, 2
    %v1720 = vperm.slane %v1680, 2
    %v1721 = vmul.f32 %v1715, %v1717
    %v1722 = vmul.f32 %v1715, %v1718
    %v1723 = vmul.f32 %v1715, %v1719
    %v1724 = vmul.f32 %v1715, %v1720
    %v1725 = vadd.f32 %v1709, %v1721
    %v1726 = vadd.f32 %v1710, %v1722
    %v1727 = vadd.f32 %v1711, %v1723
    %v1728 = vadd.f32 %v1712, %v1724
    %1729 = vset.pattern.permute.xlu0 35
    %1730 = vperm.xlu0 %1729, %v94
    %v1731 = vpop.permute.xlu0 %1730
    %v1733 = vperm.slane %v1677, 3
    %v1734 = vperm.slane %v1678, 3
    %v1735 = vperm.slane %v1679, 3
    %v1736 = vperm.slane %v1680, 3
    %v1737 = vmul.f32 %v1731, %v1733
    %v1738 = vmul.f32 %v1731, %v1734
    %v1739 = vmul.f32 %v1731, %v1735
    %v1740 = vmul.f32 %v1731, %v1736
    %v1741 = vadd.f32 %v1725, %v1737
    %v1742 = vadd.f32 %v1726, %v1738
    %v1743 = vadd.f32 %v1727, %v1739
    %v1744 = vadd.f32 %v1728, %v1740
    %v1745 = vsel %vm973, %v1741, 0.0
    %v1746 = vsel %vm973, %v1742, 0.0
    %v1747 = vadd.f32 %v1745, %v1746
    %v1748 = vsel %vm973, %v1743, 0.0
    %v1749 = vadd.f32 %v1747, %v1748
    %v1750 = vsel %vm973, %v1744, 0.0
    %v1751 = vadd.f32 %v1749, %v1750
    %1752 = vadd.xlane.f32.xlu0 %v1751
    %v1753 = vpop.xlane.xlu0 %1752
    %v1754 = vmul.f32 %v1753, 0.001953125
    %v1755 = vmul.f32 %v1741, %v1741
    %v1756 = vmul.f32 %v1742, %v1742
    %v1757 = vmul.f32 %v1743, %v1743
    %v1758 = vmul.f32 %v1744, %v1744
    %v1759 = vsel %vm973, %v1755, 0.0
    %v1760 = vsel %vm973, %v1756, 0.0
    %v1761 = vadd.f32 %v1759, %v1760
    %v1762 = vsel %vm973, %v1757, 0.0
    %v1763 = vadd.f32 %v1761, %v1762
    %v1764 = vsel %vm973, %v1758, 0.0
    %v1765 = vadd.f32 %v1763, %v1764
    %1766 = vadd.xlane.f32.xlu0 %v1765
    %v1767 = vpop.xlane.xlu0 %1766
    %v1768 = vmul.f32 %v1767, 0.001953125
    %v1769 = vmul.f32 %v1754, %v1754
    %v1770 = vsub.f32 %v1768, %v1769
    %v1771 = vadd.f32 %v1770, 1e-05
    %v1772 = vrsqrt.pop %v1771
    %v1773 = vmul.f32 %v1772, %v1771
    %v1774 = vmul.f32 %v1773, %v1772
    %v1775 = vmul.f32 0.5, %v1774
    %v1776 = vsub.f32 1.5, %v1775
    %v1777 = vmul.f32 %v1772, %v1776
    %vm1778 = vweird.f32 %v1771
    %vm1779 = vweird.f32 %v1772
    %vm1780 = vmor %vm1778, %vm1779
    %v1781 = vsel %vm1780, %v1772, %v1777
    %v1782 = vmul.f32 %v95, %v1781
    %1784 = vset.pattern.permute.xlu0 2
    %1785 = vperm.xlu0 %1784, %v1782
    %v1786 = vpop.permute.xlu0 %1785
    %v1788 = vmul.f32 %v1741, %v1786
    %v1789 = vmul.f32 %v1742, %v1786
    %v1790 = vmul.f32 %v1743, %v1786
    %v1791 = vmul.f32 %v1744, %v1786
    %v1792 = vmul.f32 %v1754, %v1782
    %1794 = vrot.lane.b32.xlu0 %v1792, 1
    %v1795 = vpop.permute.xlu0 %1794
    %v1797 = vsub.f32 %v95, %v1795
    %1799 = vset.pattern.permute.xlu0 3
    %1800 = vperm.xlu0 %1799, %v1797
    %v1801 = vpop.permute.xlu0 %1800
    %v1803 = vadd.f32 %v1788, %v1801
    %v1804 = vadd.f32 %v1789, %v1801
    %v1805 = vadd.f32 %v1790, %v1801
    %v1806 = vadd.f32 %v1791, %v1801
    %1807 = vst [vmem:[#allocation1] ss:$2 sm:$0xff] %v91
    %s1808 = scalar_lea.vmem [#allocation1], 16
    %1809 = vst [vmem:[%s1808] ss:$2 sm:$0xff] %v92
    %v1810 = vld.sshfl [vmem:[#allocation1] sm:$0xff pattern:$0x75316420]
    %v1811 = vld.sshfl [vmem:[#allocation1 + $0x8] sm:$0xff pattern:$0x75316420]
    %v1812 = vld.sshfl [vmem:[#allocation1 + $0x10] sm:$0xff pattern:$0x75316420]
    %v1813 = vld.sshfl [vmem:[#allocation1 + $0x18] sm:$0xff pattern:$0x75316420]
    %v1818 = vadd.f32 %v1803, %v1810
    %v1819 = vadd.f32 %v1804, %v1811
    %v1820 = vadd.f32 %v1805, %v1812
    %v1821 = vadd.f32 %v1806, %v1813
    %v1822 = vmax.f32 %v1818, 0.0
    %v1823 = vmax.f32 %v1819, 0.0
    %v1824 = vmax.f32 %v1820, 0.0
    %v1825 = vmax.f32 %v1821, 0.0
    %v1830 = vrot.slane %v1823, 4
    %v1831 = vrot.slane %v1825, 4
    %v1832 = vsel %vm973, %v1822, %v1830
    %v1833 = vsel %vm973, %v1824, %v1831
    %1836 = vst [vmem:[#allocation11] sm:$0xff] %v1832
    %1837 = vst [vmem:[#allocation11 + $0x8] sm:$0xff] %v1833
    // Predicated region
    $region42: #{tpu_custom_call.1} parent=1 // pred_check
      _
    $region43: #{tpu_custom_call.1} parent=1 // pred_check_branch
      %1839 = sbr.rel (0) target = $region45
    $region44: #{tpu_custom_call.1} parent=1 // pred_region
      %1841 = vsyncadd [#allocation4], 0
      %s1843 = sshll.u32 [#allocation11], 4
      %s1844 = int_to_ptr.vmem [resolvable:$true] %s1843
      %s1845 = sshll.u32 %s5, 4
      %s1846 = int_to_ptr.hbm [resolvable:$true] %s1845
      %1848 = dma.vmem_to_hbm [thread:$0]  %s1844, 256, %s1846, [#allocation4]
    $region45: #{tpu_custom_call.1} parent=1 // pred_fallthru
      _
    // Predicated region
    $region46: #{tpu_custom_call.1} parent=1 // pred_check
      _
    $region47: #{tpu_custom_call.1} parent=1 // pred_check_branch
      %1850 = sbr.rel (0) target = $region49
    $region48: #{tpu_custom_call.1} parent=1 // pred_region
      %1852 = dma.done [#allocation4], 256
    $region49: #{tpu_custom_call.1} parent=1 // pred_fallthru
      _
    %1853 = vsyncpa [#allocation3], 1
    %1854 = vsyncpa [#allocation6], 1
    %1855 = vsyncpa [#allocation9], 1
    %1856 = vsyncpa [#allocation4], 1

</llo_original>
